<compile_context>
chip_gen: v6e
topology: v6e:2x2x1
jax: 0.10.0
libtpu: 0.0.40
codegen_flags: <defaults>
</compile_context>

<pallas_src>
import math
import functools

import numpy as np
import jax
import jax.numpy as jnp
from jax import lax
from jax.experimental import pallas as pl
from jax.experimental.pallas import tpu as pltpu


# ----------------------------- host-side helpers ----------------------------

def dct_matrix(n):
    """Orthonormal DCT-II matrix D so that 2-D block DCT = D @ X @ D^T."""
    i = np.arange(n)
    a = np.arange(n)[:, None]
    D = np.sqrt(2.0 / n) * np.cos(np.pi * (2 * i[None, :] + 1) * a / (2 * n))
    D[0, :] = np.sqrt(1.0 / n)
    return jnp.asarray(D, dtype=jnp.float32)


def zigzag_perm(n):
    """Natural (row-major) index of the k-th coefficient in JPEG zigzag order."""
    order = []
    for s in range(2 * n - 1):
        if s % 2 == 0:
            rng = range(min(s, n - 1), max(0, s - n + 1) - 1, -1)
        else:
            rng = range(max(0, s - n + 1), min(s, n - 1) + 1)
        for a in rng:
            order.append(a * n + (s - a))
    return np.asarray(order, dtype=np.int32)


def sincos_pe(n, d, base):
    """1-D SinCosPe over the token axis."""
    half = d // 2
    pos = jnp.arange(n, dtype=jnp.float32)[:, None]
    freq = 1.0 / (base ** (jnp.arange(half, dtype=jnp.float32) / half))
    ang = pos * freq[None, :]
    return jnp.concatenate([jnp.sin(ang), jnp.cos(ang)], axis=-1)  # (n, d)


def init_linear(key, fan_in, fan_out):
    """PyTorch nn.Linear default init; weight stored as (fan_in, fan_out)."""
    kw, kb = jax.random.split(key)
    bound = 1.0 / math.sqrt(fan_in)
    w = jax.random.uniform(kw, (fan_in, fan_out), jnp.float32, -bound, bound)
    b = jax.random.uniform(kb, (1, fan_out), jnp.float32, -bound, bound)
    return w, b


# ----------------------------- Pallas kernels ------------------------------

def _layernorm(x, gamma, beta, eps=1e-5):
    mu = jnp.mean(x, axis=-1, keepdims=True)
    var = jnp.mean((x - mu) ** 2, axis=-1, keepdims=True)
    return (x - mu) * lax.rsqrt(var + eps) * gamma + beta


def patch_embed_kernel(x_ref, w_ref, b_ref, ape_ref, o_ref):
    """Block-DCT patch embed (+APE).  DCT/zigzag are folded into w on the host,
    so this is a single (N, F) @ (F, D) matmul plus bias + positional add."""
    x = x_ref[...].astype(jnp.float32)
    out = jnp.dot(x, w_ref[...], preferred_element_type=jnp.float32)
    o_ref[...] = (out + b_ref[...] + ape_ref[...]).astype(o_ref.dtype)


def make_stack_kernel(num_heads, head_dim, hidden, mid_dim,
                      eps=1e-5, mm_dtype=jnp.float32):
    """Fused transformer stack + final LayerNorm + out_proj.
    Grid = (batch, layer); residual stream kept resident in VMEM scratch."""
    D = hidden
    Md = mid_dim
    scale = 1.0 / math.sqrt(head_dim)

    def mm(a, b):
        # optionally cast matmul operands (e.g. bf16 on v6e/v7x), f32 accumulate
        return jnp.dot(a.astype(mm_dtype), b.astype(mm_dtype),
                       preferred_element_type=jnp.float32)

    def kernel(x_ref,
               g1_ref, be1_ref, wqkv_ref, bqkv_ref, wo_ref, bo_ref,
               g2_ref, be2_ref, w12_ref, b12_ref, w3_ref, b3_ref,
               gf_ref, bf_ref, wout_ref, bout_ref,
               o_ref, h_scr):
        layer = pl.program_id(1)

        @pl.when(layer == 0)
        def _():
            h_scr[...] = x_ref[...].astype(jnp.float32)

        x = h_scr[...]

        # ----- token mixer: x = x + MHA(LN(x)) -----
        xn = _layernorm(x, g1_ref[0], be1_ref[0], eps)
        qkv = mm(xn, wqkv_ref[0]) + bqkv_ref[0]          # fused q,k,v projection
        q = qkv[:, :D] * scale                           # scale folded into q
        k = qkv[:, D:2 * D]
        v = qkv[:, 2 * D:]

        heads = []
        for h in range(num_heads):                       # small static head loop
            c0 = h * head_dim
            qh = q[:, c0:c0 + head_dim]
            kh = k[:, c0:c0 + head_dim]
            vh = v[:, c0:c0 + head_dim]
            s = lax.dot_general(qh, kh, (((1,), (1,)), ((), ())),
                                preferred_element_type=jnp.float32)
            s = s - jnp.max(s, axis=-1, keepdims=True)
            p = jnp.exp(s)
            p = p * pl.reciprocal(jnp.sum(p, axis=-1, keepdims=True), approx=True)
            heads.append(jnp.dot(p, vh, preferred_element_type=jnp.float32))
        attn = jnp.concatenate(heads, axis=-1)           # re-concat heads
        attn = mm(attn, wo_ref[0]) + bo_ref[0]           # one (N,D)@(D,D) matmul
        x = x + attn

        # ----- channel mixer: x = x + GLU(LN(x)) -----
        xn2 = _layernorm(x, g2_ref[0], be2_ref[0], eps)
        ug = mm(xn2, w12_ref[0]) + b12_ref[0]            # fused w1|w2 matmul
        u = ug[:, :Md]
        g = ug[:, Md:]
        hch = (u * jax.nn.sigmoid(u)) * g                # silu(u) * g
        y = mm(hch, w3_ref[0]) + b3_ref[0]
        x = x + y

        h_scr[...] = x

        # ----- final LayerNorm + out_proj fused into the last layer step -----
        @pl.when(layer == pl.num_programs(1) - 1)
        def _():
            xf = _layernorm(x, gf_ref[...], bf_ref[...], eps)
            o_ref[...] = (mm(xf, wout_ref[...]) + bout_ref[...]).astype(o_ref.dtype)

    return kernel


def final_proj_kernel(x_ref, gf_ref, bf_ref, w_ref, b_ref, o_ref, *, eps=1e-5):
    """out_proj(final_norm(x)) — used for the use_block_dct_only path."""
    x = x_ref[...].astype(jnp.float32)
    xf = _layernorm(x, gf_ref[...], bf_ref[...], eps)
    o_ref[...] = (jnp.dot(xf, w_ref[...], preferred_element_type=jnp.float32)
                  + b_ref[...]).astype(o_ref.dtype)


# ----------------------------- parameters ----------------------------------

def build_params(key, cfg):
    C = cfg["in_channels"]
    bs = cfg["dct_block_size"]
    D = cfg["hidden_channels"]
    E = cfg["embed_dim"]
    Md = cfg["mid_dim"]
    L = cfg["num_layers"]
    F = C * bs * bs
    N = (cfg["image_size"] // bs) ** 2
    Epad = max(128, ((E + 127) // 128) * 128)

    keys = jax.random.split(key, 3 + max(L, 1))

    # --- patch embed: Linear(F -> D) applied to zigzag-flattened block DCT ---
    w_pe_t, b_pe = init_linear(keys[0], F, D)             # (F, D), (1, D)
    Dm = dct_matrix(bs)
    KD = jnp.kron(Dm, Dm).T                               # (bs*bs, bs*bs)
    kdct = jnp.kron(jnp.eye(C, dtype=jnp.float32), KD)    # x_blocks @ kdct = DCT coeffs
    if cfg["use_zigzag"]:
        zz = zigzag_perm(bs)
        perm = np.concatenate([c * bs * bs + zz for c in range(C)])
        w_pe = w_pe_t[np.argsort(perm)]                   # exact zigzag fold
    else:
        w_pe = w_pe_t
    # fold the DCT into the embed weight: (x @ kdct) @ w_pe == x @ w_eff
    w_eff = jnp.dot(kdct, w_pe)                           # (F, D)

    run_stack = (not cfg["use_block_dct_only"]) and L > 0
    ape = sincos_pe(N, D, cfg["theta_base"])
    if not (run_stack and cfg["use_ape"]):
        ape = jnp.zeros_like(ape)

    ones = jnp.ones((1, D), jnp.float32)
    zeros = jnp.zeros((1, D), jnp.float32)

    layers = None
    if run_stack:
        g1l, be1l, wqkvl, bqkvl, wol, bol = [], [], [], [], [], []
        g2l, be2l, w12l, b12l, w3l, b3l = [], [], [], [], [], []
        for i in range(L):
            k = jax.random.split(keys[2 + i], 7)
            wq, bq = init_linear(k[0], D, D)
            wk, bk = init_linear(k[1], D, D)
            wv, bv = init_linear(k[2], D, D)
            wo, bo = init_linear(k[3], D, D)
            w1, c1 = init_linear(k[4], D, Md)
            w2, c2 = init_linear(k[5], D, Md)
            w3, c3 = init_linear(k[6], Md, D)
            g1l.append(ones); be1l.append(zeros)
            wqkvl.append(jnp.concatenate([wq, wk, wv], axis=1))     # (D, 3D)
            bqkvl.append(jnp.concatenate([bq, bk, bv], axis=1))     # (1, 3D)
            wol.append(wo); bol.append(bo)
            g2l.append(ones); be2l.append(zeros)
            w12l.append(jnp.concatenate([w1, w2], axis=1))          # (D, 2Md)
            b12l.append(jnp.concatenate([c1, c2], axis=1))          # (1, 2Md)
            w3l.append(w3); b3l.append(c3)
        layers = dict(
            g1=jnp.stack(g1l), be1=jnp.stack(be1l),
            wqkv=jnp.stack(wqkvl), bqkv=jnp.stack(bqkvl),
            wo=jnp.stack(wol), bo=jnp.stack(bol),
            g2=jnp.stack(g2l), be2=jnp.stack(be2l),
            w12=jnp.stack(w12l), b12=jnp.stack(b12l),
            w3=jnp.stack(w3l), b3=jnp.stack(b3l))

    # out_proj padded to a lane-dense 128-wide slab (sliced in the wrapper)
    w_out, b_out = init_linear(keys[1], D, E)
    w_out_pad = jnp.zeros((D, Epad), jnp.float32).at[:, :E].set(w_out)
    b_out_pad = jnp.zeros((1, Epad), jnp.float32).at[:, :E].set(b_out)

    return dict(w_eff=w_eff, b_pe=b_pe, ape=ape, layers=layers,
                gf=ones, bf=zeros, w_out_pad=w_out_pad, b_out_pad=b_out_pad)


# ----------------------------- forward (wrapper) ----------------------------

def block_dct_transformer_encoder(x, params, cfg):
    B, C, H, W = x.shape
    bs = cfg["dct_block_size"]
    nh, nw = H // bs, W // bs
    N = nh * nw
    D = cfg["hidden_channels"]
    E = cfg["embed_dim"]
    Md = cfg["mid_dim"]
    L = cfg["num_layers"]
    F = C * bs * bs
    Epad = params["w_out_pad"].shape[1]
    mm_dtype = jnp.bfloat16 if cfg.get("use_bf16_matmul", False) else jnp.float32
    VMEM_LIMIT = 64 * 1024 * 1024   # fits v7x's 64 MiB physical VMEM per TC

    # patch extraction (glue): NCHW -> (B*N, C*bs*bs), inner order = (c, i, j)
    xp = x.reshape(B, C, nh, bs, nw, bs)
    xp = jnp.transpose(xp, (0, 2, 4, 1, 3, 5)).reshape(B * N, F)

    # --- block-DCT patch embed (+APE): grid over batch ("parallel") ---
    x2d = pl.pallas_call(
        patch_embed_kernel,
        out_shape=jax.ShapeDtypeStruct((B * N, D), jnp.float32),
        grid_spec=pltpu.PrefetchScalarGridSpec(
            num_scalar_prefetch=0, grid=(B,),
            in_specs=[
                pl.BlockSpec((N, F), lambda b: (b, 0)),
                pl.BlockSpec((F, D), lambda b: (0, 0)),
                pl.BlockSpec((1, D), lambda b: (0, 0)),
                pl.BlockSpec((N, D), lambda b: (0, 0)),
            ],
            out_specs=pl.BlockSpec((N, D), lambda b: (b, 0))),
        compiler_params=pltpu.CompilerParams(
            dimension_semantics=("parallel",),
            vmem_limit_bytes=VMEM_LIMIT),
    )(xp, params["w_eff"], params["b_pe"], params["ape"])

    run_stack = (not cfg["use_block_dct_only"]) and L > 0

    if run_stack:
        lp = params["layers"]
        kernel = make_stack_kernel(cfg["num_heads"], D // cfg["num_heads"],
                                   D, Md, mm_dtype=mm_dtype)

        wmap = lambda b, l: (l, 0, 0)        # per-layer stacked weights (streamed)
        cmap = lambda b, l: (0, 0)           # constants (resident)

        in_specs = [
            pl.BlockSpec((N, D), lambda b, l: (b, 0)),       # x (resident per b)
            pl.BlockSpec((1, 1, D), wmap),                   # ln1 gamma
            pl.BlockSpec((1, 1, D), wmap),                   # ln1 beta
            pl.BlockSpec((1, D, 3 * D), wmap),               # wqkv
            pl.BlockSpec((1, 1, 3 * D), wmap),               # bqkv
            pl.BlockSpec((1, D, D), wmap),                   # wo
            pl.BlockSpec((1, 1, D), wmap),                   # bo
            pl.BlockSpec((1, 1, D), wmap),                   # ln2 gamma
            pl.BlockSpec((1, 1, D), wmap),                   # ln2 beta
            pl.BlockSpec((1, D, 2 * Md), wmap),              # w1|w2
            pl.BlockSpec((1, 1, 2 * Md), wmap),              # b1|b2
            pl.BlockSpec((1, Md, D), wmap),                  # w3
            pl.BlockSpec((1, 1, D), wmap),                   # b3
            pl.BlockSpec((1, D), cmap),                      # final-norm gamma
            pl.BlockSpec((1, D), cmap),                      # final-norm beta
            pl.BlockSpec((D, Epad), cmap),                   # out_proj W (padded)
            pl.BlockSpec((1, Epad), cmap),                   # out_proj b (padded)
        ]

        out_pad = pl.pallas_call(
            kernel,
            out_shape=jax.ShapeDtypeStruct((B * N, Epad), jnp.float32),
            grid_spec=pltpu.PrefetchScalarGridSpec(
                num_scalar_prefetch=0, grid=(B, L),
                in_specs=in_specs,
                out_specs=pl.BlockSpec((N, Epad), lambda b, l: (b, 0)),
                scratch_shapes=[pltpu.VMEM((N, D), jnp.float32)]),
            compiler_params=pltpu.CompilerParams(
                dimension_semantics=("parallel", "arbitrary"),
                vmem_limit_bytes=VMEM_LIMIT),
        )(x2d, lp["g1"], lp["be1"], lp["wqkv"], lp["bqkv"], lp["wo"], lp["bo"],
          lp["g2"], lp["be2"], lp["w12"], lp["b12"], lp["w3"], lp["b3"],
          params["gf"], params["bf"], params["w_out_pad"], params["b_out_pad"])
    else:
        out_pad = pl.pallas_call(
            final_proj_kernel,
            out_shape=jax.ShapeDtypeStruct((B * N, Epad), jnp.float32),
            grid_spec=pltpu.PrefetchScalarGridSpec(
                num_scalar_prefetch=0, grid=(B,),
                in_specs=[
                    pl.BlockSpec((N, D), lambda b: (b, 0)),
                    pl.BlockSpec((1, D), lambda b: (0, 0)),
                    pl.BlockSpec((1, D), lambda b: (0, 0)),
                    pl.BlockSpec((D, Epad), lambda b: (0, 0)),
                    pl.BlockSpec((1, Epad), lambda b: (0, 0)),
                ],
                out_specs=pl.BlockSpec((N, Epad), lambda b: (b, 0))),
            compiler_params=pltpu.CompilerParams(
                dimension_semantics=("parallel",),
                vmem_limit_bytes=VMEM_LIMIT),
        )(x2d, params["gf"], params["bf"],
          params["w_out_pad"], params["b_out_pad"])

    # slice the lane-dense padded projection back to embed_dim (glue)
    return out_pad.reshape(B, N, Epad)[:, :, :E]


# ----------------------------- main -----------------------------------------

if __name__ == "__main__":
    cfg = dict(
        image_size=16,
        in_channels=4,
        dct_block_size=4,        # -> 4x4 = 16 patches
        hidden_channels=32,
        num_heads=2,
        mid_dim=64,
        embed_dim=8,             # out_dim of out_proj
        num_layers=2,
        theta_base=10000.0,
        use_ape=True,
        use_zigzag=True,
        use_block_dct_only=False,
        bias=True,
        use_bf16_matmul=False,   # set True on v6e/v7x for bf16 MXU matmuls
    )

    key = jax.random.PRNGKey(0)
    kx, kp = jax.random.split(key)
    x = jax.random.normal(
        kx, (2, cfg["in_channels"], cfg["image_size"], cfg["image_size"]),
        jnp.float32)
    params = build_params(kp, cfg)

    fwd = jax.jit(functools.partial(block_dct_transformer_encoder, cfg=cfg))
    out = fwd(x, params)
    jax.block_until_ready(out)

    num_patch = (cfg["image_size"] // cfg["dct_block_size"]) ** 2
    assert out.shape == (2, num_patch, cfg["embed_dim"]), out.shape
    assert bool(jnp.all(jnp.isfinite(out)))
    print("KERNEL_OK")
</pallas_src>

<mosaic_0001>
module attributes {stable_mosaic.version = 11 : i64} {
  func.func @patch_embed_kernel(%arg0: i32, %arg1: memref<16x64xf32, #tpu.memory_space<vmem>>, %arg2: memref<64x32xf32, #tpu.memory_space<vmem>>, %arg3: memref<1x32xf32, #tpu.memory_space<vmem>>, %arg4: memref<16x32xf32, #tpu.memory_space<vmem>>, %arg5: memref<16x32xf32, #tpu.memory_space<vmem>>) attributes {dimension_semantics = [#tpu.dimension_semantics<parallel>], iteration_bounds = array<i64: 2>, scalar_prefetch = 0 : i64, scratch_operands = 0 : i64, tpu.core_type = #tpu.core_type<tc>, window_params = [{transform_indices = @transform_0, window_bounds = array<i64: 16, 64>}, {pipeline_mode = #tpu.pipeline_mode<synchronous>, transform_indices = @transform_1, window_bounds = array<i64: 64, 32>}, {pipeline_mode = #tpu.pipeline_mode<synchronous>, transform_indices = @transform_2, window_bounds = array<i64: 1, 32>}, {pipeline_mode = #tpu.pipeline_mode<synchronous>, transform_indices = @transform_3, window_bounds = array<i64: 16, 32>}, {transform_indices = @transform_4, window_bounds = array<i64: 16, 32>}]} {
    %c0 = arith.constant 0 : index
    %c0_0 = arith.constant 0 : index
    %0 = vector.load %arg1[%c0, %c0_0] : memref<16x64xf32, #tpu.memory_space<vmem>>, vector<16x64xf32>
    %c0_1 = arith.constant 0 : index
    %c0_2 = arith.constant 0 : index
    %1 = vector.load %arg2[%c0_1, %c0_2] : memref<64x32xf32, #tpu.memory_space<vmem>>, vector<64x32xf32>
    %cst = arith.constant dense<0.000000e+00> : vector<16x32xf32>
    %2 = tpu.matmul %0, %1, %cst {dimension_numbers = #tpu.dot_dimension_numbers<[1], [0], [0], [1], [0, 0, 1, 1], [], []>} : vector<16x64xf32>, vector<64x32xf32>, vector<16x32xf32> -> vector<16x32xf32>
    %c0_3 = arith.constant 0 : index
    %c0_4 = arith.constant 0 : index
    %3 = vector.load %arg3[%c0_3, %c0_4] : memref<1x32xf32, #tpu.memory_space<vmem>>, vector<1x32xf32>
    %4 = vector.broadcast %3 : vector<1x32xf32> to vector<16x32xf32>
    %5 = arith.addf %2, %4 : vector<16x32xf32>
    %c0_5 = arith.constant 0 : index
    %c0_6 = arith.constant 0 : index
    %6 = vector.load %arg4[%c0_5, %c0_6] : memref<16x32xf32, #tpu.memory_space<vmem>>, vector<16x32xf32>
    %7 = arith.addf %5, %6 : vector<16x32xf32>
    %c0_7 = arith.constant 0 : index
    %c0_8 = arith.constant 0 : index
    %8 = vector.load %arg5[%c0_7, %c0_8] : memref<16x32xf32, #tpu.memory_space<vmem>>, vector<16x32xf32>
    tpu.vector_store %arg5[%c0_7, %c0_8], %7 {strides = array<i32>} : memref<16x32xf32, #tpu.memory_space<vmem>>, vector<16x32xf32>,
    return
  }
  func.func @transform_0(%arg0: i32) -> (i32, i32) {
    %c0_i32 = arith.constant 0 : i32
    %c0_i32_0 = arith.constant 0 : i32
    return %arg0, %c0_i32 : i32, i32
  }
  func.func @transform_1(%arg0: i32) -> (i32, i32) {
    %c0_i32 = arith.constant 0 : i32
    %c0_i32_0 = arith.constant 0 : i32
    %c0_i32_1 = arith.constant 0 : i32
    return %c0_i32, %c0_i32_0 : i32, i32
  }
  func.func @transform_2(%arg0: i32) -> (i32, i32) {
    %c0_i32 = arith.constant 0 : i32
    %c0_i32_0 = arith.constant 0 : i32
    %c0_i32_1 = arith.constant 0 : i32
    return %c0_i32, %c0_i32_0 : i32, i32
  }
  func.func @transform_3(%arg0: i32) -> (i32, i32) {
    %c0_i32 = arith.constant 0 : i32
    %c0_i32_0 = arith.constant 0 : i32
    %c0_i32_1 = arith.constant 0 : i32
    return %c0_i32, %c0_i32_0 : i32, i32
  }
  func.func @transform_4(%arg0: i32) -> (i32, i32) {
    %c0_i32 = arith.constant 0 : i32
    %c0_i32_0 = arith.constant 0 : i32
    return %arg0, %c0_i32 : i32, i32
  }
}

module attributes {stable_mosaic.version = 11 : i64} {
  func.func @kernel(%arg0: i32, %arg1: i32, %arg2: memref<16x32xf32, #tpu.memory_space<vmem>>, %arg3: memref<1x1x32xf32, #tpu.memory_space<vmem>>, %arg4: memref<1x1x32xf32, #tpu.memory_space<vmem>>, %arg5: memref<1x32x96xf32, #tpu.memory_space<vmem>>, %arg6: memref<1x1x96xf32, #tpu.memory_space<vmem>>, %arg7: memref<1x32x32xf32, #tpu.memory_space<vmem>>, %arg8: memref<1x1x32xf32, #tpu.memory_space<vmem>>, %arg9: memref<1x1x32xf32, #tpu.memory_space<vmem>>, %arg10: memref<1x1x32xf32, #tpu.memory_space<vmem>>, %arg11: memref<1x32x128xf32, #tpu.memory_space<vmem>>, %arg12: memref<1x1x128xf32, #tpu.memory_space<vmem>>, %arg13: memref<1x64x32xf32, #tpu.memory_space<vmem>>, %arg14: memref<1x1x32xf32, #tpu.memory_space<vmem>>, %arg15: memref<1x32xf32, #tpu.memory_space<vmem>>, %arg16: memref<1x32xf32, #tpu.memory_space<vmem>>, %arg17: memref<32x128xf32, #tpu.memory_space<vmem>>, %arg18: memref<1x128xf32, #tpu.memory_space<vmem>>, %arg19: memref<16x128xf32, #tpu.memory_space<vmem>>, %arg20: memref<16x32xf32, #tpu.memory_space<vmem>>) attributes {dimension_semantics = [#tpu.dimension_semantics<parallel>, #tpu.dimension_semantics<arbitrary>], iteration_bounds = array<i64: 2, 2>, scalar_prefetch = 0 : i64, scratch_operands = 1 : i64, tpu.core_type = #tpu.core_type<tc>, window_params = [{transform_indices = @transform_0, window_bounds = array<i64: 16, 32>}, {transform_indices = @transform_1, window_bounds = array<i64: 1, 1, 32>}, {transform_indices = @transform_2, window_bounds = array<i64: 1, 1, 32>}, {transform_indices = @transform_3, window_bounds = array<i64: 1, 32, 96>}, {transform_indices = @transform_4, window_bounds = array<i64: 1, 1, 96>}, {transform_indices = @transform_5, window_bounds = array<i64: 1, 32, 32>}, {transform_indices = @transform_6, window_bounds = array<i64: 1, 1, 32>}, {transform_indices = @transform_7, window_bounds = array<i64: 1, 1, 32>}, {transform_indices = @transform_8, window_bounds = array<i64: 1, 1, 32>}, {transform_indices = @transform_9, window_bounds = array<i64: 1, 32, 128>}, {transform_indices = @transform_10, window_bounds = array<i64: 1, 1, 128>}, {transform_indices = @transform_11, window_bounds = array<i64: 1, 64, 32>}, {transform_indices = @transform_12, window_bounds = array<i64: 1, 1, 32>}, {pipeline_mode = #tpu.pipeline_mode<synchronous>, transform_indices = @transform_13, window_bounds = array<i64: 1, 32>}, {pipeline_mode = #tpu.pipeline_mode<synchronous>, transform_indices = @transform_14, window_bounds = array<i64: 1, 32>}, {pipeline_mode = #tpu.pipeline_mode<synchronous>, transform_indices = @transform_15, window_bounds = array<i64: 32, 128>}, {pipeline_mode = #tpu.pipeline_mode<synchronous>, transform_indices = @transform_16, window_bounds = array<i64: 1, 128>}, {transform_indices = @transform_17, window_bounds = array<i64: 16, 128>}]} {
    %c0_i32 = arith.constant 0 : i32
    %0 = arith.cmpi eq, %arg1, %c0_i32 : i32
    %1 = arith.extui %0 : i1 to i32
    %c0_i32_0 = arith.constant 0 : i32
    %2 = arith.cmpi ne, %1, %c0_i32_0 : i32
    scf.if %2 {
      %c0_64 = arith.constant 0 : index
      %c0_65 = arith.constant 0 : index
      %135 = vector.load %arg2[%c0_64, %c0_65] : memref<16x32xf32, #tpu.memory_space<vmem>>, vector<16x32xf32>
      %c0_66 = arith.constant 0 : index
      %c0_67 = arith.constant 0 : index
      %136 = vector.load %arg20[%c0_66, %c0_67] : memref<16x32xf32, #tpu.memory_space<vmem>>, vector<16x32xf32>
      tpu.vector_store %arg20[%c0_66, %c0_67], %135 {strides = array<i32>} : memref<16x32xf32, #tpu.memory_space<vmem>>, vector<16x32xf32>,
    } else {
    }
    %c0 = arith.constant 0 : index
    %c0_1 = arith.constant 0 : index
    %3 = vector.load %arg20[%c0, %c0_1] : memref<16x32xf32, #tpu.memory_space<vmem>>, vector<16x32xf32>
    %c0_2 = arith.constant 0 : index
    %c0_3 = arith.constant 0 : index
    %c0_4 = arith.constant 0 : index
    %4 = vector.load %arg3[%c0_2, %c0_3, %c0_4] : memref<1x1x32xf32, #tpu.memory_space<vmem>>, vector<1x1x32xf32>
    %5 = vector.shape_cast %4 : vector<1x1x32xf32> to vector<1x32xf32>
    %c0_5 = arith.constant 0 : index
    %c0_6 = arith.constant 0 : index
    %c0_7 = arith.constant 0 : index
    %6 = vector.load %arg4[%c0_5, %c0_6, %c0_7] : memref<1x1x32xf32, #tpu.memory_space<vmem>>, vector<1x1x32xf32>
    %7 = vector.shape_cast %6 : vector<1x1x32xf32> to vector<1x32xf32>
    %cst = arith.constant dense<0.000000e+00> : vector<16xf32>
    %8 = vector.multi_reduction <add>, %3, %cst [1] : vector<16x32xf32> to vector<16xf32>
    %9 = vector.shape_cast %8 : vector<16xf32> to vector<16x1xf32>
    %cst_8 = arith.constant 3.200000e+01 : f32
    %10 = vector.broadcast %cst_8 : f32 to vector<16x1xf32>
    %11 = arith.divf %9, %10 : vector<16x1xf32>
    %12 = vector.broadcast %11 : vector<16x1xf32> to vector<16x32xf32>
    %13 = arith.subf %3, %12 : vector<16x32xf32>
    %14 = arith.mulf %13, %13 : vector<16x32xf32>
    %cst_9 = arith.constant dense<0.000000e+00> : vector<16xf32>
    %15 = vector.multi_reduction <add>, %14, %cst_9 [1] : vector<16x32xf32> to vector<16xf32>
    %16 = vector.shape_cast %15 : vector<16xf32> to vector<16x1xf32>
    %cst_10 = arith.constant 3.200000e+01 : f32
    %17 = vector.broadcast %cst_10 : f32 to vector<16x1xf32>
    %18 = arith.divf %16, %17 : vector<16x1xf32>
    %19 = vector.broadcast %11 : vector<16x1xf32> to vector<16x32xf32>
    %20 = arith.subf %3, %19 : vector<16x32xf32>
    %cst_11 = arith.constant 9.99999974E-6 : f32
    %21 = vector.broadcast %cst_11 : f32 to vector<16x1xf32>
    %22 = arith.addf %18, %21 : vector<16x1xf32>
    %23 = math.rsqrt %22 : vector<16x1xf32>
    %24 = vector.broadcast %23 : vector<16x1xf32> to vector<16x32xf32>
    %25 = arith.mulf %20, %24 : vector<16x32xf32>
    %26 = vector.broadcast %5 : vector<1x32xf32> to vector<16x32xf32>
    %27 = arith.mulf %25, %26 : vector<16x32xf32>
    %28 = vector.broadcast %7 : vector<1x32xf32> to vector<16x32xf32>
    %29 = arith.addf %27, %28 : vector<16x32xf32>
    %c0_12 = arith.constant 0 : index
    %c0_13 = arith.constant 0 : index
    %c0_14 = arith.constant 0 : index
    %30 = vector.load %arg5[%c0_12, %c0_13, %c0_14] : memref<1x32x96xf32, #tpu.memory_space<vmem>>, vector<1x32x96xf32>
    %31 = vector.shape_cast %30 : vector<1x32x96xf32> to vector<32x96xf32>
    %cst_15 = arith.constant dense<0.000000e+00> : vector<16x96xf32>
    %32 = tpu.matmul %29, %31, %cst_15 {dimension_numbers = #tpu.dot_dimension_numbers<[1], [0], [0], [1], [0, 0, 1, 1], [], []>} : vector<16x32xf32>, vector<32x96xf32>, vector<16x96xf32> -> vector<16x96xf32>
    %c0_16 = arith.constant 0 : index
    %c0_17 = arith.constant 0 : index
    %c0_18 = arith.constant 0 : index
    %33 = vector.load %arg6[%c0_16, %c0_17, %c0_18] : memref<1x1x96xf32, #tpu.memory_space<vmem>>, vector<1x1x96xf32>
    %34 = vector.shape_cast %33 : vector<1x1x96xf32> to vector<1x96xf32>
    %35 = vector.broadcast %34 : vector<1x96xf32> to vector<16x96xf32>
    %36 = arith.addf %32, %35 : vector<16x96xf32>
    %37 = vector.extract_strided_slice %36 {offsets = [0, 0], sizes = [16, 32], strides = [1, 1]} : vector<16x96xf32> to vector<16x32xf32>
    %cst_19 = arith.constant 2.500000e-01 : f32
    %38 = vector.broadcast %cst_19 : f32 to vector<16x32xf32>
    %39 = arith.mulf %37, %38 : vector<16x32xf32>
    %40 = vector.extract_strided_slice %36 {offsets = [0, 32], sizes = [16, 32], strides = [1, 1]} : vector<16x96xf32> to vector<16x32xf32>
    %41 = vector.extract_strided_slice %36 {offsets = [0, 64], sizes = [16, 32], strides = [1, 1]} : vector<16x96xf32> to vector<16x32xf32>
    %42 = vector.extract_strided_slice %39 {offsets = [0, 0], sizes = [16, 16], strides = [1, 1]} : vector<16x32xf32> to vector<16x16xf32>
    %43 = vector.extract_strided_slice %40 {offsets = [0, 0], sizes = [16, 16], strides = [1, 1]} : vector<16x32xf32> to vector<16x16xf32>
    %44 = vector.extract_strided_slice %41 {offsets = [0, 0], sizes = [16, 16], strides = [1, 1]} : vector<16x32xf32> to vector<16x16xf32>
    %cst_20 = arith.constant dense<0.000000e+00> : vector<16x16xf32>
    %45 = tpu.matmul %42, %43, %cst_20 {dimension_numbers = #tpu.dot_dimension_numbers<[1], [1], [0], [0], [0, 0, 1, 0], [], []>} : vector<16x16xf32>, vector<16x16xf32>, vector<16x16xf32> -> vector<16x16xf32>
    %cst_21 = arith.constant dense<0xFF800000> : vector<16xf32>
    %46 = vector.multi_reduction <maximumf>, %45, %cst_21 [1] : vector<16x16xf32> to vector<16xf32>
    %47 = vector.shape_cast %46 : vector<16xf32> to vector<16x1xf32>
    %48 = vector.broadcast %47 : vector<16x1xf32> to vector<16x16xf32>
    %49 = arith.subf %45, %48 : vector<16x16xf32>
    %50 = math.exp %49 : vector<16x16xf32>
    %cst_22 = arith.constant dense<0.000000e+00> : vector<16xf32>
    %51 = vector.multi_reduction <add>, %50, %cst_22 [1] : vector<16x16xf32> to vector<16xf32>
    %52 = vector.shape_cast %51 : vector<16xf32> to vector<16x1xf32>
    %53 = tpu.reciprocal %52 {approx = true} : vector<16x1xf32> -> vector<16x1xf32>
    %54 = vector.broadcast %53 : vector<16x1xf32> to vector<16x16xf32>
    %55 = arith.mulf %50, %54 : vector<16x16xf32>
    %cst_23 = arith.constant dense<0.000000e+00> : vector<16x16xf32>
    %56 = tpu.matmul %55, %44, %cst_23 {dimension_numbers = #tpu.dot_dimension_numbers<[1], [0], [0], [1], [0, 0, 1, 1], [], []>} : vector<16x16xf32>, vector<16x16xf32>, vector<16x16xf32> -> vector<16x16xf32>
    %57 = vector.extract_strided_slice %39 {offsets = [0, 16], sizes = [16, 16], strides = [1, 1]} : vector<16x32xf32> to vector<16x16xf32>
    %58 = vector.extract_strided_slice %40 {offsets = [0, 16], sizes = [16, 16], strides = [1, 1]} : vector<16x32xf32> to vector<16x16xf32>
    %59 = vector.extract_strided_slice %41 {offsets = [0, 16], sizes = [16, 16], strides = [1, 1]} : vector<16x32xf32> to vector<16x16xf32>
    %cst_24 = arith.constant dense<0.000000e+00> : vector<16x16xf32>
    %60 = tpu.matmul %57, %58, %cst_24 {dimension_numbers = #tpu.dot_dimension_numbers<[1], [1], [0], [0], [0, 0, 1, 0], [], []>} : vector<16x16xf32>, vector<16x16xf32>, vector<16x16xf32> -> vector<16x16xf32>
    %cst_25 = arith.constant dense<0xFF800000> : vector<16xf32>
    %61 = vector.multi_reduction <maximumf>, %60, %cst_25 [1] : vector<16x16xf32> to vector<16xf32>
    %62 = vector.shape_cast %61 : vector<16xf32> to vector<16x1xf32>
    %63 = vector.broadcast %62 : vector<16x1xf32> to vector<16x16xf32>
    %64 = arith.subf %60, %63 : vector<16x16xf32>
    %65 = math.exp %64 : vector<16x16xf32>
    %cst_26 = arith.constant dense<0.000000e+00> : vector<16xf32>
    %66 = vector.multi_reduction <add>, %65, %cst_26 [1] : vector<16x16xf32> to vector<16xf32>
    %67 = vector.shape_cast %66 : vector<16xf32> to vector<16x1xf32>
    %68 = tpu.reciprocal %67 {approx = true} : vector<16x1xf32> -> vector<16x1xf32>
    %69 = vector.broadcast %68 : vector<16x1xf32> to vector<16x16xf32>
    %70 = arith.mulf %65, %69 : vector<16x16xf32>
    %cst_27 = arith.constant dense<0.000000e+00> : vector<16x16xf32>
    %71 = tpu.matmul %70, %59, %cst_27 {dimension_numbers = #tpu.dot_dimension_numbers<[1], [0], [0], [1], [0, 0, 1, 1], [], []>} : vector<16x16xf32>, vector<16x16xf32>, vector<16x16xf32> -> vector<16x16xf32>
    %72 = tpu.concatenate %56, %71 in 1 : vector<16x16xf32>, vector<16x16xf32> -> vector<16x32xf32>
    %c0_28 = arith.constant 0 : index
    %c0_29 = arith.constant 0 : index
    %c0_30 = arith.constant 0 : index
    %73 = vector.load %arg7[%c0_28, %c0_29, %c0_30] : memref<1x32x32xf32, #tpu.memory_space<vmem>>, vector<1x32x32xf32>
    %74 = vector.shape_cast %73 : vector<1x32x32xf32> to vector<32x32xf32>
    %cst_31 = arith.constant dense<0.000000e+00> : vector<16x32xf32>
    %75 = tpu.matmul %72, %74, %cst_31 {dimension_numbers = #tpu.dot_dimension_numbers<[1], [0], [0], [1], [0, 0, 1, 1], [], []>} : vector<16x32xf32>, vector<32x32xf32>, vector<16x32xf32> -> vector<16x32xf32>
    %c0_32 = arith.constant 0 : index
    %c0_33 = arith.constant 0 : index
    %c0_34 = arith.constant 0 : index
    %76 = vector.load %arg8[%c0_32, %c0_33, %c0_34] : memref<1x1x32xf32, #tpu.memory_space<vmem>>, vector<1x1x32xf32>
    %77 = vector.shape_cast %76 : vector<1x1x32xf32> to vector<1x32xf32>
    %78 = vector.broadcast %77 : vector<1x32xf32> to vector<16x32xf32>
    %79 = arith.addf %75, %78 : vector<16x32xf32>
    %80 = arith.addf %3, %79 : vector<16x32xf32>
    %c0_35 = arith.constant 0 : index
    %c0_36 = arith.constant 0 : index
    %c0_37 = arith.constant 0 : index
    %81 = vector.load %arg9[%c0_35, %c0_36, %c0_37] : memref<1x1x32xf32, #tpu.memory_space<vmem>>, vector<1x1x32xf32>
    %82 = vector.shape_cast %81 : vector<1x1x32xf32> to vector<1x32xf32>
    %c0_38 = arith.constant 0 : index
    %c0_39 = arith.constant 0 : index
    %c0_40 = arith.constant 0 : index
    %83 = vector.load %arg10[%c0_38, %c0_39, %c0_40] : memref<1x1x32xf32, #tpu.memory_space<vmem>>, vector<1x1x32xf32>
    %84 = vector.shape_cast %83 : vector<1x1x32xf32> to vector<1x32xf32>
    %cst_41 = arith.constant dense<0.000000e+00> : vector<16xf32>
    %85 = vector.multi_reduction <add>, %80, %cst_41 [1] : vector<16x32xf32> to vector<16xf32>
    %86 = vector.shape_cast %85 : vector<16xf32> to vector<16x1xf32>
    %cst_42 = arith.constant 3.200000e+01 : f32
    %87 = vector.broadcast %cst_42 : f32 to vector<16x1xf32>
    %88 = arith.divf %86, %87 : vector<16x1xf32>
    %89 = vector.broadcast %88 : vector<16x1xf32> to vector<16x32xf32>
    %90 = arith.subf %80, %89 : vector<16x32xf32>
    %91 = arith.mulf %90, %90 : vector<16x32xf32>
    %cst_43 = arith.constant dense<0.000000e+00> : vector<16xf32>
    %92 = vector.multi_reduction <add>, %91, %cst_43 [1] : vector<16x32xf32> to vector<16xf32>
    %93 = vector.shape_cast %92 : vector<16xf32> to vector<16x1xf32>
    %cst_44 = arith.constant 3.200000e+01 : f32
    %94 = vector.broadcast %cst_44 : f32 to vector<16x1xf32>
    %95 = arith.divf %93, %94 : vector<16x1xf32>
    %96 = vector.broadcast %88 : vector<16x1xf32> to vector<16x32xf32>
    %97 = arith.subf %80, %96 : vector<16x32xf32>
    %cst_45 = arith.constant 9.99999974E-6 : f32
    %98 = vector.broadcast %cst_45 : f32 to vector<16x1xf32>
    %99 = arith.addf %95, %98 : vector<16x1xf32>
    %100 = math.rsqrt %99 : vector<16x1xf32>
    %101 = vector.broadcast %100 : vector<16x1xf32> to vector<16x32xf32>
    %102 = arith.mulf %97, %101 : vector<16x32xf32>
    %103 = vector.broadcast %82 : vector<1x32xf32> to vector<16x32xf32>
    %104 = arith.mulf %102, %103 : vector<16x32xf32>
    %105 = vector.broadcast %84 : vector<1x32xf32> to vector<16x32xf32>
    %106 = arith.addf %104, %105 : vector<16x32xf32>
    %c0_46 = arith.constant 0 : index
    %c0_47 = arith.constant 0 : index
    %c0_48 = arith.constant 0 : index
    %107 = vector.load %arg11[%c0_46, %c0_47, %c0_48] : memref<1x32x128xf32, #tpu.memory_space<vmem>>, vector<1x32x128xf32>
    %108 = vector.shape_cast %107 : vector<1x32x128xf32> to vector<32x128xf32>
    %cst_49 = arith.constant dense<0.000000e+00> : vector<16x128xf32>
    %109 = tpu.matmul %106, %108, %cst_49 {dimension_numbers = #tpu.dot_dimension_numbers<[1], [0], [0], [1], [0, 0, 1, 1], [], []>} : vector<16x32xf32>, vector<32x128xf32>, vector<16x128xf32> -> vector<16x128xf32>
    %c0_50 = arith.constant 0 : index
    %c0_51 = arith.constant 0 : index
    %c0_52 = arith.constant 0 : index
    %110 = vector.load %arg12[%c0_50, %c0_51, %c0_52] : memref<1x1x128xf32, #tpu.memory_space<vmem>>, vector<1x1x128xf32>
    %111 = vector.shape_cast %110 : vector<1x1x128xf32> to vector<1x128xf32>
    %112 = vector.broadcast %111 : vector<1x128xf32> to vector<16x128xf32>
    %113 = arith.addf %109, %112 : vector<16x128xf32>
    %114 = vector.extract_strided_slice %113 {offsets = [0, 0], sizes = [16, 64], strides = [1, 1]} : vector<16x128xf32> to vector<16x64xf32>
    %115 = vector.extract_strided_slice %113 {offsets = [0, 64], sizes = [16, 64], strides = [1, 1]} : vector<16x128xf32> to vector<16x64xf32>
    %116 = arith.negf %114 : vector<16x64xf32>
    %117 = math.exp %116 : vector<16x64xf32>
    %cst_53 = arith.constant 1.000000e+00 : f32
    %118 = vector.broadcast %cst_53 : f32 to vector<16x64xf32>
    %119 = arith.addf %118, %117 : vector<16x64xf32>
    %120 = arith.divf %118, %119 : vector<16x64xf32>
    %121 = arith.mulf %114, %120 : vector<16x64xf32>
    %122 = arith.mulf %121, %115 : vector<16x64xf32>
    %c0_54 = arith.constant 0 : index
    %c0_55 = arith.constant 0 : index
    %c0_56 = arith.constant 0 : index
    %123 = vector.load %arg13[%c0_54, %c0_55, %c0_56] : memref<1x64x32xf32, #tpu.memory_space<vmem>>, vector<1x64x32xf32>
    %124 = vector.shape_cast %123 : vector<1x64x32xf32> to vector<64x32xf32>
    %cst_57 = arith.constant dense<0.000000e+00> : vector<16x32xf32>
    %125 = tpu.matmul %122, %124, %cst_57 {dimension_numbers = #tpu.dot_dimension_numbers<[1], [0], [0], [1], [0, 0, 1, 1], [], []>} : vector<16x64xf32>, vector<64x32xf32>, vector<16x32xf32> -> vector<16x32xf32>
    %c0_58 = arith.constant 0 : index
    %c0_59 = arith.constant 0 : index
    %c0_60 = arith.constant 0 : index
    %126 = vector.load %arg14[%c0_58, %c0_59, %c0_60] : memref<1x1x32xf32, #tpu.memory_space<vmem>>, vector<1x1x32xf32>
    %127 = vector.shape_cast %126 : vector<1x1x32xf32> to vector<1x32xf32>
    %128 = vector.broadcast %127 : vector<1x32xf32> to vector<16x32xf32>
    %129 = arith.addf %125, %128 : vector<16x32xf32>
    %130 = arith.addf %80, %129 : vector<16x32xf32>
    %c0_61 = arith.constant 0 : index
    %c0_62 = arith.constant 0 : index
    %131 = vector.load %arg20[%c0_61, %c0_62] : memref<16x32xf32, #tpu.memory_space<vmem>>, vector<16x32xf32>
    tpu.vector_store %arg20[%c0_61, %c0_62], %130 {strides = array<i32>} : memref<16x32xf32, #tpu.memory_space<vmem>>, vector<16x32xf32>,
    %c1_i32 = arith.constant 1 : i32
    %132 = arith.cmpi eq, %arg1, %c1_i32 : i32
    %133 = arith.extui %132 : i1 to i32
    %c0_i32_63 = arith.constant 0 : i32
    %134 = arith.cmpi ne, %133, %c0_i32_63 : i32
    scf.if %134 {
      %c0_64 = arith.constant 0 : index
      %c0_65 = arith.constant 0 : index
      %135 = vector.load %arg15[%c0_64, %c0_65] : memref<1x32xf32, #tpu.memory_space<vmem>>, vector<1x32xf32>
      %c0_66 = arith.constant 0 : index
      %c0_67 = arith.constant 0 : index
      %136 = vector.load %arg16[%c0_66, %c0_67] : memref<1x32xf32, #tpu.memory_space<vmem>>, vector<1x32xf32>
      %cst_68 = arith.constant dense<0.000000e+00> : vector<16xf32>
      %137 = vector.multi_reduction <add>, %130, %cst_68 [1] : vector<16x32xf32> to vector<16xf32>
      %138 = vector.shape_cast %137 : vector<16xf32> to vector<16x1xf32>
      %cst_69 = arith.constant 3.200000e+01 : f32
      %139 = vector.broadcast %cst_69 : f32 to vector<16x1xf32>
      %140 = arith.divf %138, %139 : vector<16x1xf32>
      %141 = vector.broadcast %140 : vector<16x1xf32> to vector<16x32xf32>
      %142 = arith.subf %130, %141 : vector<16x32xf32>
      %143 = arith.mulf %142, %142 : vector<16x32xf32>
      %cst_70 = arith.constant dense<0.000000e+00> : vector<16xf32>
      %144 = vector.multi_reduction <add>, %143, %cst_70 [1] : vector<16x32xf32> to vector<16xf32>
      %145 = vector.shape_cast %144 : vector<16xf32> to vector<16x1xf32>
      %cst_71 = arith.constant 3.200000e+01 : f32
      %146 = vector.broadcast %cst_71 : f32 to vector<16x1xf32>
      %147 = arith.divf %145, %146 : vector<16x1xf32>
      %148 = vector.broadcast %140 : vector<16x1xf32> to vector<16x32xf32>
      %149 = arith.subf %130, %148 : vector<16x32xf32>
      %cst_72 = arith.constant 9.99999974E-6 : f32
      %150 = vector.broadcast %cst_72 : f32 to vector<16x1xf32>
      %151 = arith.addf %147, %150 : vector<16x1xf32>
      %152 = math.rsqrt %151 : vector<16x1xf32>
      %153 = vector.broadcast %152 : vector<16x1xf32> to vector<16x32xf32>
      %154 = arith.mulf %149, %153 : vector<16x32xf32>
      %155 = vector.broadcast %135 : vector<1x32xf32> to vector<16x32xf32>
      %156 = arith.mulf %154, %155 : vector<16x32xf32>
      %157 = vector.broadcast %136 : vector<1x32xf32> to vector<16x32xf32>
      %158 = arith.addf %156, %157 : vector<16x32xf32>
      %c0_73 = arith.constant 0 : index
      %c0_74 = arith.constant 0 : index
      %159 = vector.load %arg17[%c0_73, %c0_74] : memref<32x128xf32, #tpu.memory_space<vmem>>, vector<32x128xf32>
      %cst_75 = arith.constant dense<0.000000e+00> : vector<16x128xf32>
      %160 = tpu.matmul %158, %159, %cst_75 {dimension_numbers = #tpu.dot_dimension_numbers<[1], [0], [0], [1], [0, 0, 1, 1], [], []>} : vector<16x32xf32>, vector<32x128xf32>, vector<16x128xf32> -> vector<16x128xf32>
      %c0_76 = arith.constant 0 : index
      %c0_77 = arith.constant 0 : index
      %161 = vector.load %arg18[%c0_76, %c0_77] : memref<1x128xf32, #tpu.memory_space<vmem>>, vector<1x128xf32>
      %162 = vector.broadcast %161 : vector<1x128xf32> to vector<16x128xf32>
      %163 = arith.addf %160, %162 : vector<16x128xf32>
      %c0_78 = arith.constant 0 : index
      %c0_79 = arith.constant 0 : index
      %164 = vector.load %arg19[%c0_78, %c0_79] : memref<16x128xf32, #tpu.memory_space<vmem>>, vector<16x128xf32>
      tpu.vector_store %arg19[%c0_78, %c0_79], %163 {strides = array<i32>} : memref<16x128xf32, #tpu.memory_space<vmem>>, vector<16x128xf32>,
    } else {
    }
    return
  }
  func.func @transform_0(%arg0: i32, %arg1: i32) -> (i32, i32) {
    %c0_i32 = arith.constant 0 : i32
    %c0_i32_0 = arith.constant 0 : i32
    return %arg0, %c0_i32 : i32, i32
  }
  func.func @transform_1(%arg0: i32, %arg1: i32) -> (i32, i32, i32) {
    %c0_i32 = arith.constant 0 : i32
    %c0_i32_0 = arith.constant 0 : i32
    %c0_i32_1 = arith.constant 0 : i32
    return %arg1, %c0_i32, %c0_i32_0 : i32, i32, i32
  }
  func.func @transform_2(%arg0: i32, %arg1: i32) -> (i32, i32, i32) {
    %c0_i32 = arith.constant 0 : i32
    %c0_i32_0 = arith.constant 0 : i32
    %c0_i32_1 = arith.constant 0 : i32
    return %arg1, %c0_i32, %c0_i32_0 : i32, i32, i32
  }
  func.func @transform_3(%arg0: i32, %arg1: i32) -> (i32, i32, i32) {
    %c0_i32 = arith.constant 0 : i32
    %c0_i32_0 = arith.constant 0 : i32
    %c0_i32_1 = arith.constant 0 : i32
    return %arg1, %c0_i32, %c0_i32_0 : i32, i32, i32
  }
  func.func @transform_4(%arg0: i32, %arg1: i32) -> (i32, i32, i32) {
    %c0_i32 = arith.constant 0 : i32
    %c0_i32_0 = arith.constant 0 : i32
    %c0_i32_1 = arith.constant 0 : i32
    return %arg1, %c0_i32, %c0_i32_0 : i32, i32, i32
  }
  func.func @transform_5(%arg0: i32, %arg1: i32) -> (i32, i32, i32) {
    %c0_i32 = arith.constant 0 : i32
    %c0_i32_0 = arith.constant 0 : i32
    %c0_i32_1 = arith.constant 0 : i32
    return %arg1, %c0_i32, %c0_i32_0 : i32, i32, i32
  }
  func.func @transform_6(%arg0: i32, %arg1: i32) -> (i32, i32, i32) {
    %c0_i32 = arith.constant 0 : i32
    %c0_i32_0 = arith.constant 0 : i32
    %c0_i32_1 = arith.constant 0 : i32
    return %arg1, %c0_i32, %c0_i32_0 : i32, i32, i32
  }
  func.func @transform_7(%arg0: i32, %arg1: i32) -> (i32, i32, i32) {
    %c0_i32 = arith.constant 0 : i32
    %c0_i32_0 = arith.constant 0 : i32
    %c0_i32_1 = arith.constant 0 : i32
    return %arg1, %c0_i32, %c0_i32_0 : i32, i32, i32
  }
  func.func @transform_8(%arg0: i32, %arg1: i32) -> (i32, i32, i32) {
    %c0_i32 = arith.constant 0 : i32
    %c0_i32_0 = arith.constant 0 : i32
    %c0_i32_1 = arith.constant 0 : i32
    return %arg1, %c0_i32, %c0_i32_0 : i32, i32, i32
  }
  func.func @transform_9(%arg0: i32, %arg1: i32) -> (i32, i32, i32) {
    %c0_i32 = arith.constant 0 : i32
    %c0_i32_0 = arith.constant 0 : i32
    %c0_i32_1 = arith.constant 0 : i32
    return %arg1, %c0_i32, %c0_i32_0 : i32, i32, i32
  }
  func.func @transform_10(%arg0: i32, %arg1: i32) -> (i32, i32, i32) {
    %c0_i32 = arith.constant 0 : i32
    %c0_i32_0 = arith.constant 0 : i32
    %c0_i32_1 = arith.constant 0 : i32
    return %arg1, %c0_i32, %c0_i32_0 : i32, i32, i32
  }
  func.func @transform_11(%arg0: i32, %arg1: i32) -> (i32, i32, i32) {
    %c0_i32 = arith.constant 0 : i32
    %c0_i32_0 = arith.constant 0 : i32
    %c0_i32_1 = arith.constant 0 : i32
    return %arg1, %c0_i32, %c0_i32_0 : i32, i32, i32
  }
  func.func @transform_12(%arg0: i32, %arg1: i32) -> (i32, i32, i32) {
    %c0_i32 = arith.constant 0 : i32
    %c0_i32_0 = arith.constant 0 : i32
    %c0_i32_1 = arith.constant 0 : i32
    return %arg1, %c0_i32, %c0_i32_0 : i32, i32, i32
  }
  func.func @transform_13(%arg0: i32, %arg1: i32) -> (i32, i32) {
    %c0_i32 = arith.constant 0 : i32
    %c0_i32_0 = arith.constant 0 : i32
    %c0_i32_1 = arith.constant 0 : i32
    return %c0_i32, %c0_i32_0 : i32, i32
  }
  func.func @transform_14(%arg0: i32, %arg1: i32) -> (i32, i32) {
    %c0_i32 = arith.constant 0 : i32
    %c0_i32_0 = arith.constant 0 : i32
    %c0_i32_1 = arith.constant 0 : i32
    return %c0_i32, %c0_i32_0 : i32, i32
  }
  func.func @transform_15(%arg0: i32, %arg1: i32) -> (i32, i32) {
    %c0_i32 = arith.constant 0 : i32
    %c0_i32_0 = arith.constant 0 : i32
    %c0_i32_1 = arith.constant 0 : i32
    return %c0_i32, %c0_i32_0 : i32, i32
  }
  func.func @transform_16(%arg0: i32, %arg1: i32) -> (i32, i32) {
    %c0_i32 = arith.constant 0 : i32
    %c0_i32_0 = arith.constant 0 : i32
    %c0_i32_1 = arith.constant 0 : i32
    return %c0_i32, %c0_i32_0 : i32, i32
  }
  func.func @transform_17(%arg0: i32, %arg1: i32) -> (i32, i32) {
    %c0_i32 = arith.constant 0 : i32
    %c0_i32_0 = arith.constant 0 : i32
    return %arg0, %c0_i32 : i32, i32
  }
}

</mosaic_0001>

<llo_original>
// kernel: block_dct_transformer_encoder.2
$region0: #{block_dct_transformer_encoder.2}
  #allocation0 [shape = 'u32[]', space=smem, size = 0x4, offset = 0x4, fixed_abs, tag = 'smem constant byte address 0x4 - core index']
  #allocation1 [shape = 'u32[144,128]{1,0:T(1,128)}', space=vmem, size = 0x12000, scoped, tag = 'internal scratch']
  %s0 = inlined_call_operand.vmem [shape: f32[32,64], index: 0, kind: input, shape index: {}]
  %s1 = inlined_call_operand.vmem [shape: f32[64,32], index: 1, kind: input, shape index: {}]
  %s2 = inlined_call_operand.vmem [shape: f32[1,32], index: 2, kind: input, shape index: {}]
  %s3 = inlined_call_operand.vmem [shape: f32[16,32], index: 3, kind: input, shape index: {}]
  %s4 = inlined_call_operand.vmem [shape: f32[32,32], index: 4, kind: output, shape index: {}]
  %s5 = sld [smem:[#allocation0]]
  $region49: #{block_dct_transformer_encoder.2} parent=0
    _
  %s7 = ssub.s32 1, %s5
  %s8 = scalar_select 0, %s7, %s5
  loop: start=0, step=1, limit=4
  $region2: #{block_dct_transformer_encoder.2} parent=0 // loop_pre_header
    _
  $region3: #{block_dct_transformer_encoder.2} parent=0 // loop_header
    %s10 = sphi 0, %s14
    %p11 = scmp.ge.s32.totalorder %s10, 4
    %s20 = sphi 0, %s22
    %s23 = sphi 0, %s20
    %s24 = sphi 0, %s23
    %s40 = sphi 0, %s24
    %s44 = sphi 0, %s44
    %s46 = sphi 0, %s44
    %s47 = sphi 0, %s46
    %s61 = sphi 0, %s47
    %s65 = sphi 0, %s65
    %s67 = sphi 0, %s65
    %s68 = sphi 0, %s67
    %s82 = sphi 0, %s68
    %s86 = sphi 0, %s86
    %s88 = sphi 0, %s86
    %s89 = sphi 0, %s88
    %s103 = sphi 0, %s89
    %s109 = sphi 0, %s111
    %s112 = sphi 0, %s109
    %s113 = sphi 0, %s112
    %s129 = sphi 0, %s113
  $region4: #{block_dct_transformer_encoder.2} parent=0 // loop_header_branch
    %13 = sbr.rel (%p11) target = $region8
  $region5: #{block_dct_transformer_encoder.2} parent=0 // loop_body
    %s15 = ssub.s32 %s10, 1
    %s16 = ssub.s32 %s10, 2
    %s17 = sadd.s32 %s10, 1
    %s18 = ssub.s32 %s10, %s17
    %p19 = scmp.eq.s32.totalorder %s18, 0
    %s21 = sadd.s32 %s20, 1
    %s22 = scalar_select %p19, %s20, %s21
    %p25 = pneg %p19
    %p26 = scmp.eq.s32.totalorder %s10, 1
    %p27 = por %p25, %p26
    %p28 = scmp.ne.s32.totalorder %s20, %s23
    %p29 = scmp.eq.s32.totalorder %s10, 0
    %p30 = por %p28, %p29
    %p31 = scmp.ne.s32.totalorder %s20, %s23
    %p32 = scmp.eq.s32.totalorder %s15, 1
    %p33 = por %p31, %p32
    %p34 = scmp.ne.s32.totalorder %s23, %s24
    %p35 = scmp.eq.s32.totalorder %s15, 0
    %p36 = por %p34, %p35
    %p37 = scmp.ne.s32.totalorder %s23, %s24
    %p38 = scmp.eq.s32.totalorder %s16, 1
    %p39 = por %p37, %p38
    %p41 = scmp.ne.s32.totalorder %s24, %s40
    %p42 = scmp.eq.s32.totalorder %s16, 0
    %p43 = por %p41, %p42
    %s45 = sadd.s32 %s44, 1
    %p48 = scmp.eq.s32.totalorder %s10, 1
    %p49 = scmp.ne.s32.totalorder %s44, %s46
    %p50 = scmp.eq.s32.totalorder %s10, 0
    %p51 = por %p49, %p50
    %p52 = scmp.ne.s32.totalorder %s44, %s46
    %p53 = scmp.eq.s32.totalorder %s15, 1
    %p54 = por %p52, %p53
    %p55 = scmp.ne.s32.totalorder %s46, %s47
    %p56 = scmp.eq.s32.totalorder %s15, 0
    %p57 = por %p55, %p56
    %p58 = scmp.ne.s32.totalorder %s46, %s47
    %p59 = scmp.eq.s32.totalorder %s16, 1
    %p60 = por %p58, %p59
    %p62 = scmp.ne.s32.totalorder %s47, %s61
    %p63 = scmp.eq.s32.totalorder %s16, 0
    %p64 = por %p62, %p63
    %s66 = sadd.s32 %s65, 1
    %p69 = scmp.eq.s32.totalorder %s10, 1
    %p70 = scmp.ne.s32.totalorder %s65, %s67
    %p71 = scmp.eq.s32.totalorder %s10, 0
    %p72 = por %p70, %p71
    %p73 = scmp.ne.s32.totalorder %s65, %s67
    %p74 = scmp.eq.s32.totalorder %s15, 1
    %p75 = por %p73, %p74
    %p76 = scmp.ne.s32.totalorder %s67, %s68
    %p77 = scmp.eq.s32.totalorder %s15, 0
    %p78 = por %p76, %p77
    %p79 = scmp.ne.s32.totalorder %s67, %s68
    %p80 = scmp.eq.s32.totalorder %s16, 1
    %p81 = por %p79, %p80
    %p83 = scmp.ne.s32.totalorder %s68, %s82
    %p84 = scmp.eq.s32.totalorder %s16, 0
    %p85 = por %p83, %p84
    %s87 = sadd.s32 %s86, 1
    %p90 = scmp.eq.s32.totalorder %s10, 1
    %p91 = scmp.ne.s32.totalorder %s86, %s88
    %p92 = scmp.eq.s32.totalorder %s10, 0
    %p93 = por %p91, %p92
    %p94 = scmp.ne.s32.totalorder %s86, %s88
    %p95 = scmp.eq.s32.totalorder %s15, 1
    %p96 = por %p94, %p95
    %p97 = scmp.ne.s32.totalorder %s88, %s89
    %p98 = scmp.eq.s32.totalorder %s15, 0
    %p99 = por %p97, %p98
    %p100 = scmp.ne.s32.totalorder %s88, %s89
    %p101 = scmp.eq.s32.totalorder %s16, 1
    %p102 = por %p100, %p101
    %p104 = scmp.ne.s32.totalorder %s89, %s103
    %p105 = scmp.eq.s32.totalorder %s16, 0
    %p106 = por %p104, %p105
    %s107 = ssub.s32 %s10, %s17
    %p108 = scmp.eq.s32.totalorder %s107, 0
    %s110 = sadd.s32 %s109, 1
    %s111 = scalar_select %p108, %s109, %s110
    %p114 = pneg %p108
    %p115 = scmp.eq.s32.totalorder %s10, 1
    %p116 = por %p114, %p115
    %p117 = scmp.ne.s32.totalorder %s109, %s112
    %p118 = scmp.eq.s32.totalorder %s10, 0
    %p119 = por %p117, %p118
    %p120 = scmp.ne.s32.totalorder %s109, %s112
    %p121 = scmp.eq.s32.totalorder %s15, 1
    %p122 = por %p120, %p121
    %p123 = scmp.ne.s32.totalorder %s112, %s113
    %p124 = scmp.eq.s32.totalorder %s15, 0
    %p125 = por %p123, %p124
    %p126 = scmp.ne.s32.totalorder %s112, %s113
    %p127 = scmp.eq.s32.totalorder %s16, 1
    %p128 = por %p126, %p127
    %p130 = scmp.ne.s32.totalorder %s113, %s129
    %p131 = scmp.eq.s32.totalorder %s16, 0
    %p132 = por %p130, %p131
    %p133 = scmp.le.s32.totalorder 1, %s10
    %p134 = scmp.lt.s32.totalorder %s10, 3
    %p135 = pnand %p133, %p134
    %p136 = pneg %p135
    // Predicated region
    $region9: #{block_dct_transformer_encoder.2} parent=5 // pred_check
      _
    $region10: #{block_dct_transformer_encoder.2} parent=5 // pred_check_branch
      %138 = sbr.rel (%p135) target = $region12
    $region11: #{block_dct_transformer_encoder.2} parent=5 // pred_region
      %s139 = ssub.s32 %s10, 1
      // Predicated region
      $region13: #{block_dct_transformer_encoder.2} parent=11 // pred_check
        %p140 = pneg %p57
      $region14: #{block_dct_transformer_encoder.2} parent=11 // pred_check_branch
        %142 = sbr.rel (%p140) target = $region16
      $region15: #{block_dct_transformer_encoder.2} parent=11 // pred_region
        _
      $region16: #{block_dct_transformer_encoder.2} parent=11 // pred_fallthru
        _
      // Predicated region
      $region17: #{block_dct_transformer_encoder.2} parent=11 // pred_check
        %p143 = pneg %p78
      $region18: #{block_dct_transformer_encoder.2} parent=11 // pred_check_branch
        %145 = sbr.rel (%p143) target = $region20
      $region19: #{block_dct_transformer_encoder.2} parent=11 // pred_region
        _
      $region20: #{block_dct_transformer_encoder.2} parent=11 // pred_fallthru
        _
      // Predicated region
      $region21: #{block_dct_transformer_encoder.2} parent=11 // pred_check
        %p146 = pneg %p99
      $region22: #{block_dct_transformer_encoder.2} parent=11 // pred_check_branch
        %148 = sbr.rel (%p146) target = $region24
      $region23: #{block_dct_transformer_encoder.2} parent=11 // pred_region
        _
      $region24: #{block_dct_transformer_encoder.2} parent=11 // pred_fallthru
        _
    $region12: #{block_dct_transformer_encoder.2} parent=5 // pred_fallthru
      _
    %p149 = scmp.lt.s32.totalorder %s10, 2
    // Predicated region
    $region25: #{block_dct_transformer_encoder.2} parent=5 // pred_check
      %p150 = pneg %p149
    $region26: #{block_dct_transformer_encoder.2} parent=5 // pred_check_branch
      %152 = sbr.rel (%p150) target = $region28
    $region27: #{block_dct_transformer_encoder.2} parent=5 // pred_region
      // Predicated region
      $region29: #{block_dct_transformer_encoder.2} parent=27 // pred_check
        %p153 = pneg %p30
      $region30: #{block_dct_transformer_encoder.2} parent=27 // pred_check_branch
        %155 = sbr.rel (%p153) target = $region32
      $region31: #{block_dct_transformer_encoder.2} parent=27 // pred_region
        %s156 = smul.u32 2, %s10
        %p157 = scmp.lt.s32.totalorder %s156, 3
        %s158 = scalar_select %p157, %s156, 3
        %s159 = smul.addr %s158, 8
        %s160 = scalar_lea.vmem %s0, %s159
        %s161 = smul.u32 2, %s10
      $region32: #{block_dct_transformer_encoder.2} parent=27 // pred_fallthru
        _
    $region28: #{block_dct_transformer_encoder.2} parent=5 // pred_fallthru
      _
    %p162 = scmp.le.s32.totalorder 1, %s10
    %p163 = scmp.lt.s32.totalorder %s10, 3
    %p164 = pnand %p162, %p163
    %p165 = pneg %p164
    // Predicated region
    $region33: #{block_dct_transformer_encoder.2} parent=5 // pred_check
      _
    $region34: #{block_dct_transformer_encoder.2} parent=5 // pred_check_branch
      %167 = sbr.rel (%p164) target = $region36
    $region35: #{block_dct_transformer_encoder.2} parent=5 // pred_region
      %s168 = ssub.s32 %s10, 1
      %s169 = smul.u32 2, %s15
      %p170 = scmp.lt.s32.totalorder %s169, 3
      %s171 = scalar_select %p170, %s169, 3
      %s172 = smul.addr %s171, 8
      %s173 = scalar_lea.vmem %s0, %s172
      %p174 = pneg %p36
      %p175 = pneg %p33
      %p176 = pneg %p57
      %p177 = pneg %p54
      %p178 = pneg %p78
      %p179 = pneg %p75
      %p180 = pneg %p99
      %p181 = pneg %p96
      %p182 = pneg %p125
      %p183 = pneg %p122
      %s184 = smul.u32 2, %s15
      %p185 = scmp.lt.s32.totalorder %s184, 3
      %s186 = scalar_select %p185, %s184, 3
      %s187 = smul.addr %s186, 8
      %s188 = scalar_lea.vmem %s4, %s187
      %s189 = smul.u32 2, %s15
      %p190 = scmp.lt.s32.totalorder %s189, 3
      %s191 = scalar_select %p190, %s189, 3
      %s192 = smul.addr %s191, 8
      %s193 = scalar_lea.vmem %s0, %s192
      %s194 = smul.u32 2, %s15
      %s195 = smul.u32 2, %s15
      %p196 = scmp.lt.s32.totalorder %s195, 3
      %s197 = scalar_select %p196, %s195, 3
      %s198 = smul.addr %s197, 8
      %s199 = scalar_lea.vmem %s4, %s198
      %s200 = smul.u32 2, %s15
      %v201 = vld [vmem:[%s193] sm:$0xff]
      %v202 = vld [vmem:[%s193 + $0x8] sm:$0xff]
      %v203 = vld [vmem:[%s1] sm:$0xff]
      %v204 = vld [vmem:[%s1 + $0x8] sm:$0xff]
      %v205 = vld [vmem:[%s1 + $0x10] sm:$0xff]
      %v206 = vld [vmem:[%s1 + $0x18] sm:$0xff]
      %v207 = vld [vmem:[%s1 + $0x20] sm:$0xff]
      %v208 = vld [vmem:[%s1 + $0x28] sm:$0xff]
      %v209 = vld [vmem:[%s1 + $0x30] sm:$0xff]
      %v210 = vld [vmem:[%s1 + $0x38] sm:$0xff]
      %v211 = vld [vmem:[%s2] sm:$0x1]
      %v213 = vlaneseq
      %v214 = vshrl.u32 %v213, 7
      %v215 = vsub.s32 0, %v214
      %v216 = vrot.slane %v211, %v215
      %vm218 = vcmask 523264
      %v220 = vsel %vm218, %v201, 0
      %v223 = vsel %vm218, %v202, 0
      %225 = vmatprep.subr.mxu0 0.0
      %226 = vmatpush1.msra.mxu0 0.0
      %227 = vmatprep.subr.mxu0 0.0
      %228 = vmatpush1.msra.mxu0 0.0
      %229 = vmatprep.subr.mxu0 0.0
      %230 = vmatpush1.msra.mxu0 0.0
      %231 = vmatprep.subr.mxu0 0.0
      %232 = vmatpush1.msra.mxu0 0.0
      %233 = vmatprep.subr.mxu0 0.0
      %234 = vmatpush1.msra.mxu0 0.0
      %235 = vmatprep.subr.mxu0 0.0
      %236 = vmatpush1.msra.mxu0 0.0
      %237 = vmatprep.subr.mxu0 0.0
      %238 = vmatpush1.msra.mxu0 0.0
      %239 = vmatprep.subr.mxu0 0.0
      %240 = vmatpush1.msra.mxu0 0.0
      %241 = vmatprep.subr.mxu0 0.0
      %242 = vmatpush1.msra.mxu0 %v210
      %243 = vmatprep.subr.mxu0 0.0
      %244 = vmatpush1.msra.mxu0 %v209
      %245 = vmatprep.subr.mxu0 0.0
      %246 = vmatpush1.msra.mxu0 %v208
      %247 = vmatprep.subr.mxu0 0.0
      %248 = vmatpush1.msra.mxu0 %v207
      %249 = vmatprep.subr.mxu0 0.0
      %250 = vmatpush1.msra.mxu0 %v206
      %251 = vmatprep.subr.mxu0 0.0
      %252 = vmatpush1.msra.mxu0 %v205
      %253 = vmatprep.subr.mxu0 0.0
      %254 = vmatpush1.msra.mxu0 %v204
      %255 = vmatprep.subr.mxu0 0.0
      %256 = vmatpush1.msra.mxu0 %v203
      %257 = vmatprep.subr.mxu0 0.0
      %258 = vmatpush2.msra.mxu0 0.0
      %259 = vmatprep.subr.mxu0 0.0
      %260 = vmatpush2.msra.mxu0 0.0
      %261 = vmatprep.subr.mxu0 0.0
      %262 = vmatpush2.msra.mxu0 0.0
      %263 = vmatprep.subr.mxu0 0.0
      %264 = vmatpush2.msra.mxu0 0.0
      %265 = vmatprep.subr.mxu0 0.0
      %266 = vmatpush2.msra.mxu0 0.0
      %267 = vmatprep.subr.mxu0 0.0
      %268 = vmatpush2.msra.mxu0 0.0
      %269 = vmatprep.subr.mxu0 0.0
      %270 = vmatpush2.msra.mxu0 0.0
      %271 = vmatprep.subr.mxu0 0.0
      %272 = vmatpush2.msra.mxu0 0.0
      %273 = vmatprep.subr.mxu0 0.0
      %274 = vmatpush2.msra.mxu0 0.0
      %275 = vmatprep.subr.mxu0 0.0
      %276 = vmatpush2.msra.mxu0 0.0
      %277 = vmatprep.subr.mxu0 0.0
      %278 = vmatpush2.msra.mxu0 0.0
      %279 = vmatprep.subr.mxu0 0.0
      %280 = vmatpush2.msra.mxu0 0.0
      %281 = vmatprep.subr.mxu0 0.0
      %282 = vmatpush2.msra.mxu0 0.0
      %283 = vmatprep.subr.mxu0 0.0
      %284 = vmatpush2.msra.mxu0 0.0
      %285 = vmatprep.subr.mxu0 0.0
      %286 = vmatpush2.msra.mxu0 0.0
      %287 = vmatprep.subr.mxu0 0.0
      %288 = vmatpush2.msra.mxu0 0.0
      %289 = vmatprep.mubr.f32.mxu0 0.0
      %290 = vmatmul.mubr.f32.gmra.mxu0 %v220
      %v291 = vpop.f32.mrf.mxu0
      %v292 = vadd.f32 %v216, %v291
      %v293 = vpop.f32.mrf.mxu0
      %294 = vmatprep.mubr.f32.mxu0 0.0
      %295 = vmatmul.mubr.f32.gmra.mxu0 %v223
      %v296 = vpop.f32.mrf.mxu0
      %v297 = vadd.f32 %v216, %v296
      %v298 = vpop.f32.mrf.mxu0
      %299 = vdwg.mxu0
      %v300 = vld [vmem:[%s3] sm:$0xff]
      %v301 = vld [vmem:[%s3 + $0x8] sm:$0xff]
      %v302 = vadd.f32 %v292, %v300
      %v303 = vadd.f32 %v297, %v301
      %vm304 = vcmask 261120
      %305 = vst.msk [vmem:[%s199] sm:$0xff] %vm304, %v302
      %306 = vst.msk [vmem:[%s199 + $0x8] sm:$0xff] %vm304, %v303
      %s307 = smul.u32 2, %s15
      %p308 = scmp.lt.s32.totalorder %s307, 3
      %s309 = scalar_select %p308, %s307, 3
      %s310 = smul.addr %s309, 8
      %s311 = scalar_lea.vmem %s4, %s310
      // Predicated region
      $region37: #{block_dct_transformer_encoder.2} parent=35 // pred_check
        %p312 = pneg %p122
      $region38: #{block_dct_transformer_encoder.2} parent=35 // pred_check_branch
        %314 = sbr.rel (%p312) target = $region40
      $region39: #{block_dct_transformer_encoder.2} parent=35 // pred_region
        %s315 = smul.u32 2, %s15
      $region40: #{block_dct_transformer_encoder.2} parent=35 // pred_fallthru
        _
    $region36: #{block_dct_transformer_encoder.2} parent=5 // pred_fallthru
      _
    %p316 = scmp.le.s32.totalorder 2, %s10
    // Predicated region
    $region41: #{block_dct_transformer_encoder.2} parent=5 // pred_check
      %p317 = pneg %p316
    $region42: #{block_dct_transformer_encoder.2} parent=5 // pred_check_branch
      %319 = sbr.rel (%p317) target = $region44
    $region43: #{block_dct_transformer_encoder.2} parent=5 // pred_region
      %s320 = ssub.s32 %s10, 2
      // Predicated region
      $region45: #{block_dct_transformer_encoder.2} parent=43 // pred_check
        %p321 = pneg %p128
      $region46: #{block_dct_transformer_encoder.2} parent=43 // pred_check_branch
        %323 = sbr.rel (%p321) target = $region48
      $region47: #{block_dct_transformer_encoder.2} parent=43 // pred_region
        %s324 = smul.u32 2, %s16
        %p325 = scmp.lt.s32.totalorder %s324, 3
        %s326 = scalar_select %p325, %s324, 3
        %s327 = smul.addr %s326, 8
        %s328 = scalar_lea.vmem %s4, %s327
      $region48: #{block_dct_transformer_encoder.2} parent=43 // pred_fallthru
        _
    $region44: #{block_dct_transformer_encoder.2} parent=5 // pred_fallthru
      _
  $region6: #{block_dct_transformer_encoder.2} parent=0 // loop_footer
    %s14 = sadd.s32 1, %s10
  $region7: #{block_dct_transformer_encoder.2} parent=0 // loop_footer_branch
    %9 = sbr.rel target = $region3
  $region8: #{block_dct_transformer_encoder.2} parent=0 // loop_exit
    _

// kernel: block_dct_transformer_encoder.3
$region0: #{block_dct_transformer_encoder.3}
  #allocation0 [shape = 'u32[]', space=smem, size = 0x4, offset = 0x4, fixed_abs, tag = 'smem constant byte address 0x4 - core index']
  #allocation1 [shape = 'u32[144,128]{1,0:T(1,128)}', space=vmem, size = 0x12000, scoped, tag = 'internal scratch']
  #allocation2 [shape = 'f32[16,32]{1,0:T(8,128)}', space=vmem, size = 0x2000, scoped, tag = 'scratch operand']
  %s0 = inlined_call_operand.vmem [shape: f32[32,32], index: 0, kind: input, shape index: {}]
  %s1 = inlined_call_operand.vmem [shape: f32[2,1,32], index: 1, kind: input, shape index: {}]
  %s2 = inlined_call_operand.vmem [shape: f32[2,1,32], index: 2, kind: input, shape index: {}]
  %s3 = inlined_call_operand.vmem [shape: f32[2,32,96], index: 3, kind: input, shape index: {}]
  %s4 = inlined_call_operand.vmem [shape: f32[2,1,96], index: 4, kind: input, shape index: {}]
  %s5 = inlined_call_operand.vmem [shape: f32[2,32,32], index: 5, kind: input, shape index: {}]
  %s6 = inlined_call_operand.vmem [shape: f32[2,1,32], index: 6, kind: input, shape index: {}]
  %s7 = inlined_call_operand.vmem [shape: f32[2,1,32], index: 7, kind: input, shape index: {}]
  %s8 = inlined_call_operand.vmem [shape: f32[2,1,32], index: 8, kind: input, shape index: {}]
  %s9 = inlined_call_operand.vmem [shape: f32[2,32,128], index: 9, kind: input, shape index: {}]
  %s10 = inlined_call_operand.vmem [shape: f32[2,1,128], index: 10, kind: input, shape index: {}]
  %s11 = inlined_call_operand.vmem [shape: f32[2,64,32], index: 11, kind: input, shape index: {}]
  %s12 = inlined_call_operand.vmem [shape: f32[2,1,32], index: 12, kind: input, shape index: {}]
  %s13 = inlined_call_operand.vmem [shape: f32[1,32], index: 13, kind: input, shape index: {}]
  %s14 = inlined_call_operand.vmem [shape: f32[1,32], index: 14, kind: input, shape index: {}]
  %s15 = inlined_call_operand.vmem [shape: f32[32,128], index: 15, kind: input, shape index: {}]
  %s16 = inlined_call_operand.vmem [shape: f32[1,128], index: 16, kind: input, shape index: {}]
  %s17 = inlined_call_operand.vmem [shape: f32[32,128], index: 17, kind: output, shape index: {}]
  %s18 = sld [smem:[#allocation0]]
  $region109: #{block_dct_transformer_encoder.3} parent=0
    _
  %s20 = ssub.s32 1, %s18
  %s21 = scalar_select 0, %s20, %s18
  loop: start=0, step=1, limit=6
  $region2: #{block_dct_transformer_encoder.3} parent=0 // loop_pre_header
    _
  $region3: #{block_dct_transformer_encoder.3} parent=0 // loop_header
    %s23 = sphi 0, %s27
    %p24 = scmp.ge.s32.totalorder %s23, 6
    %s30 = sphi 0, %s42
    %s31 = sphi 0, %s38
    %s32 = sphi 0, %s30
    %s33 = sphi 0, %s31
    %s34 = sphi 0, %s32
    %s35 = sphi 0, %s33
    %s45 = sphi 0, %s47
    %s48 = sphi 0, %s45
    %s49 = sphi 0, %s48
    %s65 = sphi 0, %s49
    %s71 = sphi 0, %s73
    %s74 = sphi 0, %s71
    %s75 = sphi 0, %s74
    %s91 = sphi 0, %s75
    %s97 = sphi 0, %s99
    %s100 = sphi 0, %s97
    %s101 = sphi 0, %s100
    %s117 = sphi 0, %s101
    %s123 = sphi 0, %s125
    %s126 = sphi 0, %s123
    %s127 = sphi 0, %s126
    %s143 = sphi 0, %s127
    %s149 = sphi 0, %s151
    %s152 = sphi 0, %s149
    %s153 = sphi 0, %s152
    %s169 = sphi 0, %s153
    %s175 = sphi 0, %s177
    %s178 = sphi 0, %s175
    %s179 = sphi 0, %s178
    %s195 = sphi 0, %s179
    %s201 = sphi 0, %s203
    %s204 = sphi 0, %s201
    %s205 = sphi 0, %s204
    %s221 = sphi 0, %s205
    %s227 = sphi 0, %s229
    %s230 = sphi 0, %s227
    %s231 = sphi 0, %s230
    %s247 = sphi 0, %s231
    %s253 = sphi 0, %s255
    %s256 = sphi 0, %s253
    %s257 = sphi 0, %s256
    %s273 = sphi 0, %s257
    %s279 = sphi 0, %s281
    %s282 = sphi 0, %s279
    %s283 = sphi 0, %s282
    %s299 = sphi 0, %s283
    %s305 = sphi 0, %s307
    %s308 = sphi 0, %s305
    %s309 = sphi 0, %s308
    %s325 = sphi 0, %s309
    %s331 = sphi 0, %s333
    %s334 = sphi 0, %s331
    %s335 = sphi 0, %s334
    %s351 = sphi 0, %s335
    %s357 = sphi 0, %s359
    %s360 = sphi 0, %s357
    %s361 = sphi 0, %s360
    %s377 = sphi 0, %s361
    %s381 = sphi 0, %s381
    %s383 = sphi 0, %s381
    %s384 = sphi 0, %s383
    %s398 = sphi 0, %s384
    %s402 = sphi 0, %s402
    %s404 = sphi 0, %s402
    %s405 = sphi 0, %s404
    %s419 = sphi 0, %s405
    %s423 = sphi 0, %s423
    %s425 = sphi 0, %s423
    %s426 = sphi 0, %s425
    %s440 = sphi 0, %s426
    %s444 = sphi 0, %s444
    %s446 = sphi 0, %s444
    %s447 = sphi 0, %s446
    %s461 = sphi 0, %s447
    %s467 = sphi 0, %s469
    %s470 = sphi 0, %s467
    %s471 = sphi 0, %s470
    %s487 = sphi 0, %s471
  $region4: #{block_dct_transformer_encoder.3} parent=0 // loop_header_branch
    %26 = sbr.rel (%p24) target = $region8
  $region5: #{block_dct_transformer_encoder.3} parent=0 // loop_body
    %s28 = ssub.s32 %s23, 1
    %s29 = ssub.s32 %s23, 2
    %s36 = sadd.s32 1, %s31
    %p37 = scmp.ge.s32.totalorder %s36, 2
    %s38 = scalar_select %p37, 0, %s36
    %s39 = sadd.s32 1, %s30
    %s40 = scalar_select %p37, %s39, %s30
    %p41 = scmp.ge.s32.totalorder %s40, 2
    %s42 = scalar_select %p41, 0, %s40
    %s43 = ssub.s32 %s30, %s42
    %p44 = scmp.eq.s32.totalorder %s43, 0
    %s46 = sadd.s32 %s45, 1
    %s47 = scalar_select %p44, %s45, %s46
    %p50 = pneg %p44
    %p51 = scmp.eq.s32.totalorder %s23, 3
    %p52 = por %p50, %p51
    %p53 = scmp.ne.s32.totalorder %s45, %s48
    %p54 = scmp.eq.s32.totalorder %s23, 0
    %p55 = por %p53, %p54
    %p56 = scmp.ne.s32.totalorder %s45, %s48
    %p57 = scmp.eq.s32.totalorder %s28, 3
    %p58 = por %p56, %p57
    %p59 = scmp.ne.s32.totalorder %s48, %s49
    %p60 = scmp.eq.s32.totalorder %s28, 0
    %p61 = por %p59, %p60
    %p62 = scmp.ne.s32.totalorder %s48, %s49
    %p63 = scmp.eq.s32.totalorder %s29, 3
    %p64 = por %p62, %p63
    %p66 = scmp.ne.s32.totalorder %s49, %s65
    %p67 = scmp.eq.s32.totalorder %s29, 0
    %p68 = por %p66, %p67
    %s69 = ssub.s32 %s31, %s38
    %p70 = scmp.eq.s32.totalorder %s69, 0
    %s72 = sadd.s32 %s71, 1
    %s73 = scalar_select %p70, %s71, %s72
    %p76 = pneg %p70
    %p77 = scmp.eq.s32.totalorder %s23, 3
    %p78 = por %p76, %p77
    %p79 = scmp.ne.s32.totalorder %s71, %s74
    %p80 = scmp.eq.s32.totalorder %s23, 0
    %p81 = por %p79, %p80
    %p82 = scmp.ne.s32.totalorder %s71, %s74
    %p83 = scmp.eq.s32.totalorder %s28, 3
    %p84 = por %p82, %p83
    %p85 = scmp.ne.s32.totalorder %s74, %s75
    %p86 = scmp.eq.s32.totalorder %s28, 0
    %p87 = por %p85, %p86
    %p88 = scmp.ne.s32.totalorder %s74, %s75
    %p89 = scmp.eq.s32.totalorder %s29, 3
    %p90 = por %p88, %p89
    %p92 = scmp.ne.s32.totalorder %s75, %s91
    %p93 = scmp.eq.s32.totalorder %s29, 0
    %p94 = por %p92, %p93
    %s95 = ssub.s32 %s31, %s38
    %p96 = scmp.eq.s32.totalorder %s95, 0
    %s98 = sadd.s32 %s97, 1
    %s99 = scalar_select %p96, %s97, %s98
    %p102 = pneg %p96
    %p103 = scmp.eq.s32.totalorder %s23, 3
    %p104 = por %p102, %p103
    %p105 = scmp.ne.s32.totalorder %s97, %s100
    %p106 = scmp.eq.s32.totalorder %s23, 0
    %p107 = por %p105, %p106
    %p108 = scmp.ne.s32.totalorder %s97, %s100
    %p109 = scmp.eq.s32.totalorder %s28, 3
    %p110 = por %p108, %p109
    %p111 = scmp.ne.s32.totalorder %s100, %s101
    %p112 = scmp.eq.s32.totalorder %s28, 0
    %p113 = por %p111, %p112
    %p114 = scmp.ne.s32.totalorder %s100, %s101
    %p115 = scmp.eq.s32.totalorder %s29, 3
    %p116 = por %p114, %p115
    %p118 = scmp.ne.s32.totalorder %s101, %s117
    %p119 = scmp.eq.s32.totalorder %s29, 0
    %p120 = por %p118, %p119
    %s121 = ssub.s32 %s31, %s38
    %p122 = scmp.eq.s32.totalorder %s121, 0
    %s124 = sadd.s32 %s123, 1
    %s125 = scalar_select %p122, %s123, %s124
    %p128 = pneg %p122
    %p129 = scmp.eq.s32.totalorder %s23, 3
    %p130 = por %p128, %p129
    %p131 = scmp.ne.s32.totalorder %s123, %s126
    %p132 = scmp.eq.s32.totalorder %s23, 0
    %p133 = por %p131, %p132
    %p134 = scmp.ne.s32.totalorder %s123, %s126
    %p135 = scmp.eq.s32.totalorder %s28, 3
    %p136 = por %p134, %p135
    %p137 = scmp.ne.s32.totalorder %s126, %s127
    %p138 = scmp.eq.s32.totalorder %s28, 0
    %p139 = por %p137, %p138
    %p140 = scmp.ne.s32.totalorder %s126, %s127
    %p141 = scmp.eq.s32.totalorder %s29, 3
    %p142 = por %p140, %p141
    %p144 = scmp.ne.s32.totalorder %s127, %s143
    %p145 = scmp.eq.s32.totalorder %s29, 0
    %p146 = por %p144, %p145
    %s147 = ssub.s32 %s31, %s38
    %p148 = scmp.eq.s32.totalorder %s147, 0
    %s150 = sadd.s32 %s149, 1
    %s151 = scalar_select %p148, %s149, %s150
    %p154 = pneg %p148
    %p155 = scmp.eq.s32.totalorder %s23, 3
    %p156 = por %p154, %p155
    %p157 = scmp.ne.s32.totalorder %s149, %s152
    %p158 = scmp.eq.s32.totalorder %s23, 0
    %p159 = por %p157, %p158
    %p160 = scmp.ne.s32.totalorder %s149, %s152
    %p161 = scmp.eq.s32.totalorder %s28, 3
    %p162 = por %p160, %p161
    %p163 = scmp.ne.s32.totalorder %s152, %s153
    %p164 = scmp.eq.s32.totalorder %s28, 0
    %p165 = por %p163, %p164
    %p166 = scmp.ne.s32.totalorder %s152, %s153
    %p167 = scmp.eq.s32.totalorder %s29, 3
    %p168 = por %p166, %p167
    %p170 = scmp.ne.s32.totalorder %s153, %s169
    %p171 = scmp.eq.s32.totalorder %s29, 0
    %p172 = por %p170, %p171
    %s173 = ssub.s32 %s31, %s38
    %p174 = scmp.eq.s32.totalorder %s173, 0
    %s176 = sadd.s32 %s175, 1
    %s177 = scalar_select %p174, %s175, %s176
    %p180 = pneg %p174
    %p181 = scmp.eq.s32.totalorder %s23, 3
    %p182 = por %p180, %p181
    %p183 = scmp.ne.s32.totalorder %s175, %s178
    %p184 = scmp.eq.s32.totalorder %s23, 0
    %p185 = por %p183, %p184
    %p186 = scmp.ne.s32.totalorder %s175, %s178
    %p187 = scmp.eq.s32.totalorder %s28, 3
    %p188 = por %p186, %p187
    %p189 = scmp.ne.s32.totalorder %s178, %s179
    %p190 = scmp.eq.s32.totalorder %s28, 0
    %p191 = por %p189, %p190
    %p192 = scmp.ne.s32.totalorder %s178, %s179
    %p193 = scmp.eq.s32.totalorder %s29, 3
    %p194 = por %p192, %p193
    %p196 = scmp.ne.s32.totalorder %s179, %s195
    %p197 = scmp.eq.s32.totalorder %s29, 0
    %p198 = por %p196, %p197
    %s199 = ssub.s32 %s31, %s38
    %p200 = scmp.eq.s32.totalorder %s199, 0
    %s202 = sadd.s32 %s201, 1
    %s203 = scalar_select %p200, %s201, %s202
    %p206 = pneg %p200
    %p207 = scmp.eq.s32.totalorder %s23, 3
    %p208 = por %p206, %p207
    %p209 = scmp.ne.s32.totalorder %s201, %s204
    %p210 = scmp.eq.s32.totalorder %s23, 0
    %p211 = por %p209, %p210
    %p212 = scmp.ne.s32.totalorder %s201, %s204
    %p213 = scmp.eq.s32.totalorder %s28, 3
    %p214 = por %p212, %p213
    %p215 = scmp.ne.s32.totalorder %s204, %s205
    %p216 = scmp.eq.s32.totalorder %s28, 0
    %p217 = por %p215, %p216
    %p218 = scmp.ne.s32.totalorder %s204, %s205
    %p219 = scmp.eq.s32.totalorder %s29, 3
    %p220 = por %p218, %p219
    %p222 = scmp.ne.s32.totalorder %s205, %s221
    %p223 = scmp.eq.s32.totalorder %s29, 0
    %p224 = por %p222, %p223
    %s225 = ssub.s32 %s31, %s38
    %p226 = scmp.eq.s32.totalorder %s225, 0
    %s228 = sadd.s32 %s227, 1
    %s229 = scalar_select %p226, %s227, %s228
    %p232 = pneg %p226
    %p233 = scmp.eq.s32.totalorder %s23, 3
    %p234 = por %p232, %p233
    %p235 = scmp.ne.s32.totalorder %s227, %s230
    %p236 = scmp.eq.s32.totalorder %s23, 0
    %p237 = por %p235, %p236
    %p238 = scmp.ne.s32.totalorder %s227, %s230
    %p239 = scmp.eq.s32.totalorder %s28, 3
    %p240 = por %p238, %p239
    %p241 = scmp.ne.s32.totalorder %s230, %s231
    %p242 = scmp.eq.s32.totalorder %s28, 0
    %p243 = por %p241, %p242
    %p244 = scmp.ne.s32.totalorder %s230, %s231
    %p245 = scmp.eq.s32.totalorder %s29, 3
    %p246 = por %p244, %p245
    %p248 = scmp.ne.s32.totalorder %s231, %s247
    %p249 = scmp.eq.s32.totalorder %s29, 0
    %p250 = por %p248, %p249
    %s251 = ssub.s32 %s31, %s38
    %p252 = scmp.eq.s32.totalorder %s251, 0
    %s254 = sadd.s32 %s253, 1
    %s255 = scalar_select %p252, %s253, %s254
    %p258 = pneg %p252
    %p259 = scmp.eq.s32.totalorder %s23, 3
    %p260 = por %p258, %p259
    %p261 = scmp.ne.s32.totalorder %s253, %s256
    %p262 = scmp.eq.s32.totalorder %s23, 0
    %p263 = por %p261, %p262
    %p264 = scmp.ne.s32.totalorder %s253, %s256
    %p265 = scmp.eq.s32.totalorder %s28, 3
    %p266 = por %p264, %p265
    %p267 = scmp.ne.s32.totalorder %s256, %s257
    %p268 = scmp.eq.s32.totalorder %s28, 0
    %p269 = por %p267, %p268
    %p270 = scmp.ne.s32.totalorder %s256, %s257
    %p271 = scmp.eq.s32.totalorder %s29, 3
    %p272 = por %p270, %p271
    %p274 = scmp.ne.s32.totalorder %s257, %s273
    %p275 = scmp.eq.s32.totalorder %s29, 0
    %p276 = por %p274, %p275
    %s277 = ssub.s32 %s31, %s38
    %p278 = scmp.eq.s32.totalorder %s277, 0
    %s280 = sadd.s32 %s279, 1
    %s281 = scalar_select %p278, %s279, %s280
    %p284 = pneg %p278
    %p285 = scmp.eq.s32.totalorder %s23, 3
    %p286 = por %p284, %p285
    %p287 = scmp.ne.s32.totalorder %s279, %s282
    %p288 = scmp.eq.s32.totalorder %s23, 0
    %p289 = por %p287, %p288
    %p290 = scmp.ne.s32.totalorder %s279, %s282
    %p291 = scmp.eq.s32.totalorder %s28, 3
    %p292 = por %p290, %p291
    %p293 = scmp.ne.s32.totalorder %s282, %s283
    %p294 = scmp.eq.s32.totalorder %s28, 0
    %p295 = por %p293, %p294
    %p296 = scmp.ne.s32.totalorder %s282, %s283
    %p297 = scmp.eq.s32.totalorder %s29, 3
    %p298 = por %p296, %p297
    %p300 = scmp.ne.s32.totalorder %s283, %s299
    %p301 = scmp.eq.s32.totalorder %s29, 0
    %p302 = por %p300, %p301
    %s303 = ssub.s32 %s31, %s38
    %p304 = scmp.eq.s32.totalorder %s303, 0
    %s306 = sadd.s32 %s305, 1
    %s307 = scalar_select %p304, %s305, %s306
    %p310 = pneg %p304
    %p311 = scmp.eq.s32.totalorder %s23, 3
    %p312 = por %p310, %p311
    %p313 = scmp.ne.s32.totalorder %s305, %s308
    %p314 = scmp.eq.s32.totalorder %s23, 0
    %p315 = por %p313, %p314
    %p316 = scmp.ne.s32.totalorder %s305, %s308
    %p317 = scmp.eq.s32.totalorder %s28, 3
    %p318 = por %p316, %p317
    %p319 = scmp.ne.s32.totalorder %s308, %s309
    %p320 = scmp.eq.s32.totalorder %s28, 0
    %p321 = por %p319, %p320
    %p322 = scmp.ne.s32.totalorder %s308, %s309
    %p323 = scmp.eq.s32.totalorder %s29, 3
    %p324 = por %p322, %p323
    %p326 = scmp.ne.s32.totalorder %s309, %s325
    %p327 = scmp.eq.s32.totalorder %s29, 0
    %p328 = por %p326, %p327
    %s329 = ssub.s32 %s31, %s38
    %p330 = scmp.eq.s32.totalorder %s329, 0
    %s332 = sadd.s32 %s331, 1
    %s333 = scalar_select %p330, %s331, %s332
    %p336 = pneg %p330
    %p337 = scmp.eq.s32.totalorder %s23, 3
    %p338 = por %p336, %p337
    %p339 = scmp.ne.s32.totalorder %s331, %s334
    %p340 = scmp.eq.s32.totalorder %s23, 0
    %p341 = por %p339, %p340
    %p342 = scmp.ne.s32.totalorder %s331, %s334
    %p343 = scmp.eq.s32.totalorder %s28, 3
    %p344 = por %p342, %p343
    %p345 = scmp.ne.s32.totalorder %s334, %s335
    %p346 = scmp.eq.s32.totalorder %s28, 0
    %p347 = por %p345, %p346
    %p348 = scmp.ne.s32.totalorder %s334, %s335
    %p349 = scmp.eq.s32.totalorder %s29, 3
    %p350 = por %p348, %p349
    %p352 = scmp.ne.s32.totalorder %s335, %s351
    %p353 = scmp.eq.s32.totalorder %s29, 0
    %p354 = por %p352, %p353
    %s355 = ssub.s32 %s31, %s38
    %p356 = scmp.eq.s32.totalorder %s355, 0
    %s358 = sadd.s32 %s357, 1
    %s359 = scalar_select %p356, %s357, %s358
    %p362 = pneg %p356
    %p363 = scmp.eq.s32.totalorder %s23, 3
    %p364 = por %p362, %p363
    %p365 = scmp.ne.s32.totalorder %s357, %s360
    %p366 = scmp.eq.s32.totalorder %s23, 0
    %p367 = por %p365, %p366
    %p368 = scmp.ne.s32.totalorder %s357, %s360
    %p369 = scmp.eq.s32.totalorder %s28, 3
    %p370 = por %p368, %p369
    %p371 = scmp.ne.s32.totalorder %s360, %s361
    %p372 = scmp.eq.s32.totalorder %s28, 0
    %p373 = por %p371, %p372
    %p374 = scmp.ne.s32.totalorder %s360, %s361
    %p375 = scmp.eq.s32.totalorder %s29, 3
    %p376 = por %p374, %p375
    %p378 = scmp.ne.s32.totalorder %s361, %s377
    %p379 = scmp.eq.s32.totalorder %s29, 0
    %p380 = por %p378, %p379
    %s382 = sadd.s32 %s381, 1
    %p385 = scmp.eq.s32.totalorder %s23, 3
    %p386 = scmp.ne.s32.totalorder %s381, %s383
    %p387 = scmp.eq.s32.totalorder %s23, 0
    %p388 = por %p386, %p387
    %p389 = scmp.ne.s32.totalorder %s381, %s383
    %p390 = scmp.eq.s32.totalorder %s28, 3
    %p391 = por %p389, %p390
    %p392 = scmp.ne.s32.totalorder %s383, %s384
    %p393 = scmp.eq.s32.totalorder %s28, 0
    %p394 = por %p392, %p393
    %p395 = scmp.ne.s32.totalorder %s383, %s384
    %p396 = scmp.eq.s32.totalorder %s29, 3
    %p397 = por %p395, %p396
    %p399 = scmp.ne.s32.totalorder %s384, %s398
    %p400 = scmp.eq.s32.totalorder %s29, 0
    %p401 = por %p399, %p400
    %s403 = sadd.s32 %s402, 1
    %p406 = scmp.eq.s32.totalorder %s23, 3
    %p407 = scmp.ne.s32.totalorder %s402, %s404
    %p408 = scmp.eq.s32.totalorder %s23, 0
    %p409 = por %p407, %p408
    %p410 = scmp.ne.s32.totalorder %s402, %s404
    %p411 = scmp.eq.s32.totalorder %s28, 3
    %p412 = por %p410, %p411
    %p413 = scmp.ne.s32.totalorder %s404, %s405
    %p414 = scmp.eq.s32.totalorder %s28, 0
    %p415 = por %p413, %p414
    %p416 = scmp.ne.s32.totalorder %s404, %s405
    %p417 = scmp.eq.s32.totalorder %s29, 3
    %p418 = por %p416, %p417
    %p420 = scmp.ne.s32.totalorder %s405, %s419
    %p421 = scmp.eq.s32.totalorder %s29, 0
    %p422 = por %p420, %p421
    %s424 = sadd.s32 %s423, 1
    %p427 = scmp.eq.s32.totalorder %s23, 3
    %p428 = scmp.ne.s32.totalorder %s423, %s425
    %p429 = scmp.eq.s32.totalorder %s23, 0
    %p430 = por %p428, %p429
    %p431 = scmp.ne.s32.totalorder %s423, %s425
    %p432 = scmp.eq.s32.totalorder %s28, 3
    %p433 = por %p431, %p432
    %p434 = scmp.ne.s32.totalorder %s425, %s426
    %p435 = scmp.eq.s32.totalorder %s28, 0
    %p436 = por %p434, %p435
    %p437 = scmp.ne.s32.totalorder %s425, %s426
    %p438 = scmp.eq.s32.totalorder %s29, 3
    %p439 = por %p437, %p438
    %p441 = scmp.ne.s32.totalorder %s426, %s440
    %p442 = scmp.eq.s32.totalorder %s29, 0
    %p443 = por %p441, %p442
    %s445 = sadd.s32 %s444, 1
    %p448 = scmp.eq.s32.totalorder %s23, 3
    %p449 = scmp.ne.s32.totalorder %s444, %s446
    %p450 = scmp.eq.s32.totalorder %s23, 0
    %p451 = por %p449, %p450
    %p452 = scmp.ne.s32.totalorder %s444, %s446
    %p453 = scmp.eq.s32.totalorder %s28, 3
    %p454 = por %p452, %p453
    %p455 = scmp.ne.s32.totalorder %s446, %s447
    %p456 = scmp.eq.s32.totalorder %s28, 0
    %p457 = por %p455, %p456
    %p458 = scmp.ne.s32.totalorder %s446, %s447
    %p459 = scmp.eq.s32.totalorder %s29, 3
    %p460 = por %p458, %p459
    %p462 = scmp.ne.s32.totalorder %s447, %s461
    %p463 = scmp.eq.s32.totalorder %s29, 0
    %p464 = por %p462, %p463
    %s465 = ssub.s32 %s30, %s42
    %p466 = scmp.eq.s32.totalorder %s465, 0
    %s468 = sadd.s32 %s467, 1
    %s469 = scalar_select %p466, %s467, %s468
    %p472 = pneg %p466
    %p473 = scmp.eq.s32.totalorder %s23, 3
    %p474 = por %p472, %p473
    %p475 = scmp.ne.s32.totalorder %s467, %s470
    %p476 = scmp.eq.s32.totalorder %s23, 0
    %p477 = por %p475, %p476
    %p478 = scmp.ne.s32.totalorder %s467, %s470
    %p479 = scmp.eq.s32.totalorder %s28, 3
    %p480 = por %p478, %p479
    %p481 = scmp.ne.s32.totalorder %s470, %s471
    %p482 = scmp.eq.s32.totalorder %s28, 0
    %p483 = por %p481, %p482
    %p484 = scmp.ne.s32.totalorder %s470, %s471
    %p485 = scmp.eq.s32.totalorder %s29, 3
    %p486 = por %p484, %p485
    %p488 = scmp.ne.s32.totalorder %s471, %s487
    %p489 = scmp.eq.s32.totalorder %s29, 0
    %p490 = por %p488, %p489
    %p491 = scmp.le.s32.totalorder 1, %s23
    %p492 = scmp.lt.s32.totalorder %s23, 5
    %p493 = pnand %p491, %p492
    %p494 = pneg %p493
    // Predicated region
    $region9: #{block_dct_transformer_encoder.3} parent=5 // pred_check
      _
    $region10: #{block_dct_transformer_encoder.3} parent=5 // pred_check_branch
      %496 = sbr.rel (%p493) target = $region12
    $region11: #{block_dct_transformer_encoder.3} parent=5 // pred_region
      %s497 = ssub.s32 %s23, 1
      // Predicated region
      $region13: #{block_dct_transformer_encoder.3} parent=11 // pred_check
        %p498 = pneg %p394
      $region14: #{block_dct_transformer_encoder.3} parent=11 // pred_check_branch
        %500 = sbr.rel (%p498) target = $region16
      $region15: #{block_dct_transformer_encoder.3} parent=11 // pred_region
        _
      $region16: #{block_dct_transformer_encoder.3} parent=11 // pred_fallthru
        _
      // Predicated region
      $region17: #{block_dct_transformer_encoder.3} parent=11 // pred_check
        %p501 = pneg %p415
      $region18: #{block_dct_transformer_encoder.3} parent=11 // pred_check_branch
        %503 = sbr.rel (%p501) target = $region20
      $region19: #{block_dct_transformer_encoder.3} parent=11 // pred_region
        _
      $region20: #{block_dct_transformer_encoder.3} parent=11 // pred_fallthru
        _
      // Predicated region
      $region21: #{block_dct_transformer_encoder.3} parent=11 // pred_check
        %p504 = pneg %p436
      $region22: #{block_dct_transformer_encoder.3} parent=11 // pred_check_branch
        %506 = sbr.rel (%p504) target = $region24
      $region23: #{block_dct_transformer_encoder.3} parent=11 // pred_region
        _
      $region24: #{block_dct_transformer_encoder.3} parent=11 // pred_fallthru
        _
      // Predicated region
      $region25: #{block_dct_transformer_encoder.3} parent=11 // pred_check
        %p507 = pneg %p457
      $region26: #{block_dct_transformer_encoder.3} parent=11 // pred_check_branch
        %509 = sbr.rel (%p507) target = $region28
      $region27: #{block_dct_transformer_encoder.3} parent=11 // pred_region
        _
      $region28: #{block_dct_transformer_encoder.3} parent=11 // pred_fallthru
        _
    $region12: #{block_dct_transformer_encoder.3} parent=5 // pred_fallthru
      _
    %p510 = scmp.lt.s32.totalorder %s23, 4
    // Predicated region
    $region29: #{block_dct_transformer_encoder.3} parent=5 // pred_check
      %p511 = pneg %p510
    $region30: #{block_dct_transformer_encoder.3} parent=5 // pred_check_branch
      %513 = sbr.rel (%p511) target = $region32
    $region31: #{block_dct_transformer_encoder.3} parent=5 // pred_region
      // Predicated region
      $region33: #{block_dct_transformer_encoder.3} parent=31 // pred_check
        %p514 = pneg %p55
      $region34: #{block_dct_transformer_encoder.3} parent=31 // pred_check_branch
        %516 = sbr.rel (%p514) target = $region36
      $region35: #{block_dct_transformer_encoder.3} parent=31 // pred_region
        %s517 = smul.u32 2, %s30
        %p518 = scmp.lt.s32.totalorder %s517, 3
        %s519 = scalar_select %p518, %s517, 3
        %s520 = smul.addr %s519, 8
        %s521 = scalar_lea.vmem %s0, %s520
        %s522 = smul.u32 2, %s30
      $region36: #{block_dct_transformer_encoder.3} parent=31 // pred_fallthru
        _
      // Predicated region
      $region37: #{block_dct_transformer_encoder.3} parent=31 // pred_check
        %p523 = pneg %p81
      $region38: #{block_dct_transformer_encoder.3} parent=31 // pred_check_branch
        %525 = sbr.rel (%p523) target = $region40
      $region39: #{block_dct_transformer_encoder.3} parent=31 // pred_region
        %p526 = scmp.lt.s32.totalorder %s31, 1
        %s527 = scalar_select %p526, %s31, 1
        %s528 = scalar_lea.vmem %s1, %s527
      $region40: #{block_dct_transformer_encoder.3} parent=31 // pred_fallthru
        _
      // Predicated region
      $region41: #{block_dct_transformer_encoder.3} parent=31 // pred_check
        %p529 = pneg %p107
      $region42: #{block_dct_transformer_encoder.3} parent=31 // pred_check_branch
        %531 = sbr.rel (%p529) target = $region44
      $region43: #{block_dct_transformer_encoder.3} parent=31 // pred_region
        %p532 = scmp.lt.s32.totalorder %s31, 1
        %s533 = scalar_select %p532, %s31, 1
        %s534 = scalar_lea.vmem %s2, %s533
      $region44: #{block_dct_transformer_encoder.3} parent=31 // pred_fallthru
        _
      // Predicated region
      $region45: #{block_dct_transformer_encoder.3} parent=31 // pred_check
        %p535 = pneg %p133
      $region46: #{block_dct_transformer_encoder.3} parent=31 // pred_check_branch
        %537 = sbr.rel (%p535) target = $region48
      $region47: #{block_dct_transformer_encoder.3} parent=31 // pred_region
        %p538 = scmp.lt.s32.totalorder %s31, 1
        %s539 = scalar_select %p538, %s31, 1
        %s540 = smul.addr %s539, 4
        %s541 = smul.addr %s540, 8
        %s542 = scalar_lea.vmem %s3, %s541
      $region48: #{block_dct_transformer_encoder.3} parent=31 // pred_fallthru
        _
      // Predicated region
      $region49: #{block_dct_transformer_encoder.3} parent=31 // pred_check
        %p543 = pneg %p159
      $region50: #{block_dct_transformer_encoder.3} parent=31 // pred_check_branch
        %545 = sbr.rel (%p543) target = $region52
      $region51: #{block_dct_transformer_encoder.3} parent=31 // pred_region
        %p546 = scmp.lt.s32.totalorder %s31, 1
        %s547 = scalar_select %p546, %s31, 1
        %s548 = scalar_lea.vmem %s4, %s547
      $region52: #{block_dct_transformer_encoder.3} parent=31 // pred_fallthru
        _
      // Predicated region
      $region53: #{block_dct_transformer_encoder.3} parent=31 // pred_check
        %p549 = pneg %p185
      $region54: #{block_dct_transformer_encoder.3} parent=31 // pred_check_branch
        %551 = sbr.rel (%p549) target = $region56
      $region55: #{block_dct_transformer_encoder.3} parent=31 // pred_region
        %p552 = scmp.lt.s32.totalorder %s31, 1
        %s553 = scalar_select %p552, %s31, 1
        %s554 = smul.addr %s553, 4
        %s555 = smul.addr %s554, 8
        %s556 = scalar_lea.vmem %s5, %s555
      $region56: #{block_dct_transformer_encoder.3} parent=31 // pred_fallthru
        _
      // Predicated region
      $region57: #{block_dct_transformer_encoder.3} parent=31 // pred_check
        %p557 = pneg %p211
      $region58: #{block_dct_transformer_encoder.3} parent=31 // pred_check_branch
        %559 = sbr.rel (%p557) target = $region60
      $region59: #{block_dct_transformer_encoder.3} parent=31 // pred_region
        %p560 = scmp.lt.s32.totalorder %s31, 1
        %s561 = scalar_select %p560, %s31, 1
        %s562 = scalar_lea.vmem %s6, %s561
      $region60: #{block_dct_transformer_encoder.3} parent=31 // pred_fallthru
        _
      // Predicated region
      $region61: #{block_dct_transformer_encoder.3} parent=31 // pred_check
        %p563 = pneg %p237
      $region62: #{block_dct_transformer_encoder.3} parent=31 // pred_check_branch
        %565 = sbr.rel (%p563) target = $region64
      $region63: #{block_dct_transformer_encoder.3} parent=31 // pred_region
        %p566 = scmp.lt.s32.totalorder %s31, 1
        %s567 = scalar_select %p566, %s31, 1
        %s568 = scalar_lea.vmem %s7, %s567
      $region64: #{block_dct_transformer_encoder.3} parent=31 // pred_fallthru
        _
      // Predicated region
      $region65: #{block_dct_transformer_encoder.3} parent=31 // pred_check
        %p569 = pneg %p263
      $region66: #{block_dct_transformer_encoder.3} parent=31 // pred_check_branch
        %571 = sbr.rel (%p569) target = $region68
      $region67: #{block_dct_transformer_encoder.3} parent=31 // pred_region
        %p572 = scmp.lt.s32.totalorder %s31, 1
        %s573 = scalar_select %p572, %s31, 1
        %s574 = scalar_lea.vmem %s8, %s573
      $region68: #{block_dct_transformer_encoder.3} parent=31 // pred_fallthru
        _
      // Predicated region
      $region69: #{block_dct_transformer_encoder.3} parent=31 // pred_check
        %p575 = pneg %p289
      $region70: #{block_dct_transformer_encoder.3} parent=31 // pred_check_branch
        %577 = sbr.rel (%p575) target = $region72
      $region71: #{block_dct_transformer_encoder.3} parent=31 // pred_region
        %p578 = scmp.lt.s32.totalorder %s31, 1
        %s579 = scalar_select %p578, %s31, 1
        %s580 = smul.addr %s579, 4
        %s581 = smul.addr %s580, 8
        %s582 = scalar_lea.vmem %s9, %s581
      $region72: #{block_dct_transformer_encoder.3} parent=31 // pred_fallthru
        _
      // Predicated region
      $region73: #{block_dct_transformer_encoder.3} parent=31 // pred_check
        %p583 = pneg %p315
      $region74: #{block_dct_transformer_encoder.3} parent=31 // pred_check_branch
        %585 = sbr.rel (%p583) target = $region76
      $region75: #{block_dct_transformer_encoder.3} parent=31 // pred_region
        %p586 = scmp.lt.s32.totalorder %s31, 1
        %s587 = scalar_select %p586, %s31, 1
        %s588 = scalar_lea.vmem %s10, %s587
      $region76: #{block_dct_transformer_encoder.3} parent=31 // pred_fallthru
        _
      // Predicated region
      $region77: #{block_dct_transformer_encoder.3} parent=31 // pred_check
        %p589 = pneg %p341
      $region78: #{block_dct_transformer_encoder.3} parent=31 // pred_check_branch
        %591 = sbr.rel (%p589) target = $region80
      $region79: #{block_dct_transformer_encoder.3} parent=31 // pred_region
        %p592 = scmp.lt.s32.totalorder %s31, 1
        %s593 = scalar_select %p592, %s31, 1
        %s594 = smul.addr %s593, 8
        %s595 = smul.addr %s594, 8
        %s596 = scalar_lea.vmem %s11, %s595
      $region80: #{block_dct_transformer_encoder.3} parent=31 // pred_fallthru
        _
      // Predicated region
      $region81: #{block_dct_transformer_encoder.3} parent=31 // pred_check
        %p597 = pneg %p367
      $region82: #{block_dct_transformer_encoder.3} parent=31 // pred_check_branch
        %599 = sbr.rel (%p597) target = $region84
      $region83: #{block_dct_transformer_encoder.3} parent=31 // pred_region
        %p600 = scmp.lt.s32.totalorder %s31, 1
        %s601 = scalar_select %p600, %s31, 1
        %s602 = scalar_lea.vmem %s12, %s601
      $region84: #{block_dct_transformer_encoder.3} parent=31 // pred_fallthru
        _
    $region32: #{block_dct_transformer_encoder.3} parent=5 // pred_fallthru
      _
    %p603 = scmp.le.s32.totalorder 1, %s23
    %p604 = scmp.lt.s32.totalorder %s23, 5
    %p605 = pnand %p603, %p604
    %p606 = pneg %p605
    // Predicated region
    $region85: #{block_dct_transformer_encoder.3} parent=5 // pred_check
      _
    $region86: #{block_dct_transformer_encoder.3} parent=5 // pred_check_branch
      %608 = sbr.rel (%p605) target = $region88
    $region87: #{block_dct_transformer_encoder.3} parent=5 // pred_region
      %s609 = ssub.s32 %s23, 1
      %s610 = smul.u32 2, %s32
      %p611 = scmp.lt.s32.totalorder %s610, 3
      %s612 = scalar_select %p611, %s610, 3
      %s613 = smul.addr %s612, 8
      %s614 = scalar_lea.vmem %s0, %s613
      %p615 = pneg %p61
      %p616 = pneg %p58
      %p617 = scmp.lt.s32.totalorder %s33, 1
      %s618 = scalar_select %p617, %s33, 1
      %s619 = scalar_lea.vmem %s1, %s618
      %p620 = pneg %p87
      %p621 = pneg %p84
      %p622 = scmp.lt.s32.totalorder %s33, 1
      %s623 = scalar_select %p622, %s33, 1
      %s624 = scalar_lea.vmem %s2, %s623
      %p625 = pneg %p113
      %p626 = pneg %p110
      %p627 = scmp.lt.s32.totalorder %s33, 1
      %s628 = scalar_select %p627, %s33, 1
      %s629 = smul.addr %s628, 4
      %s630 = smul.addr %s629, 8
      %s631 = scalar_lea.vmem %s3, %s630
      %p632 = pneg %p139
      %p633 = pneg %p136
      %p634 = scmp.lt.s32.totalorder %s33, 1
      %s635 = scalar_select %p634, %s33, 1
      %s636 = scalar_lea.vmem %s4, %s635
      %p637 = pneg %p165
      %p638 = pneg %p162
      %p639 = scmp.lt.s32.totalorder %s33, 1
      %s640 = scalar_select %p639, %s33, 1
      %s641 = smul.addr %s640, 4
      %s642 = smul.addr %s641, 8
      %s643 = scalar_lea.vmem %s5, %s642
      %p644 = pneg %p191
      %p645 = pneg %p188
      %p646 = scmp.lt.s32.totalorder %s33, 1
      %s647 = scalar_select %p646, %s33, 1
      %s648 = scalar_lea.vmem %s6, %s647
      %p649 = pneg %p217
      %p650 = pneg %p214
      %p651 = scmp.lt.s32.totalorder %s33, 1
      %s652 = scalar_select %p651, %s33, 1
      %s653 = scalar_lea.vmem %s7, %s652
      %p654 = pneg %p243
      %p655 = pneg %p240
      %p656 = scmp.lt.s32.totalorder %s33, 1
      %s657 = scalar_select %p656, %s33, 1
      %s658 = scalar_lea.vmem %s8, %s657
      %p659 = pneg %p269
      %p660 = pneg %p266
      %p661 = scmp.lt.s32.totalorder %s33, 1
      %s662 = scalar_select %p661, %s33, 1
      %s663 = smul.addr %s662, 4
      %s664 = smul.addr %s663, 8
      %s665 = scalar_lea.vmem %s9, %s664
      %p666 = pneg %p295
      %p667 = pneg %p292
      %p668 = scmp.lt.s32.totalorder %s33, 1
      %s669 = scalar_select %p668, %s33, 1
      %s670 = scalar_lea.vmem %s10, %s669
      %p671 = pneg %p321
      %p672 = pneg %p318
      %p673 = scmp.lt.s32.totalorder %s33, 1
      %s674 = scalar_select %p673, %s33, 1
      %s675 = smul.addr %s674, 8
      %s676 = smul.addr %s675, 8
      %s677 = scalar_lea.vmem %s11, %s676
      %p678 = pneg %p347
      %p679 = pneg %p344
      %p680 = scmp.lt.s32.totalorder %s33, 1
      %s681 = scalar_select %p680, %s33, 1
      %s682 = scalar_lea.vmem %s12, %s681
      %p683 = pneg %p373
      %p684 = pneg %p370
      %p685 = pneg %p394
      %p686 = pneg %p391
      %p687 = pneg %p415
      %p688 = pneg %p412
      %p689 = pneg %p436
      %p690 = pneg %p433
      %p691 = pneg %p457
      %p692 = pneg %p454
      %p693 = pneg %p483
      %p694 = pneg %p480
      %s695 = smul.u32 2, %s32
      %p696 = scmp.lt.s32.totalorder %s695, 3
      %s697 = scalar_select %p696, %s695, 3
      %s698 = smul.addr %s697, 8
      %s699 = scalar_lea.vmem %s17, %s698
      %s700 = smul.u32 2, %s32
      %p701 = scmp.lt.s32.totalorder %s700, 3
      %s702 = scalar_select %p701, %s700, 3
      %s703 = smul.addr %s702, 8
      %s704 = scalar_lea.vmem %s0, %s703
      %s705 = smul.u32 2, %s32
      %p706 = scmp.lt.s32.totalorder %s33, 1
      %s707 = scalar_select %p706, %s33, 1
      %s708 = scalar_lea.vmem %s1, %s707
      %p709 = scmp.lt.s32.totalorder %s33, 1
      %s710 = scalar_select %p709, %s33, 1
      %s711 = scalar_lea.vmem %s2, %s710
      %p712 = scmp.lt.s32.totalorder %s33, 1
      %s713 = scalar_select %p712, %s33, 1
      %s714 = smul.addr %s713, 4
      %s715 = smul.addr %s714, 8
      %s716 = scalar_lea.vmem %s3, %s715
      %p717 = scmp.lt.s32.totalorder %s33, 1
      %s718 = scalar_select %p717, %s33, 1
      %s719 = scalar_lea.vmem %s4, %s718
      %p720 = scmp.lt.s32.totalorder %s33, 1
      %s721 = scalar_select %p720, %s33, 1
      %s722 = smul.addr %s721, 4
      %s723 = smul.addr %s722, 8
      %s724 = scalar_lea.vmem %s5, %s723
      %p725 = scmp.lt.s32.totalorder %s33, 1
      %s726 = scalar_select %p725, %s33, 1
      %s727 = scalar_lea.vmem %s6, %s726
      %p728 = scmp.lt.s32.totalorder %s33, 1
      %s729 = scalar_select %p728, %s33, 1
      %s730 = scalar_lea.vmem %s7, %s729
      %p731 = scmp.lt.s32.totalorder %s33, 1
      %s732 = scalar_select %p731, %s33, 1
      %s733 = scalar_lea.vmem %s8, %s732
      %p734 = scmp.lt.s32.totalorder %s33, 1
      %s735 = scalar_select %p734, %s33, 1
      %s736 = smul.addr %s735, 4
      %s737 = smul.addr %s736, 8
      %s738 = scalar_lea.vmem %s9, %s737
      %p739 = scmp.lt.s32.totalorder %s33, 1
      %s740 = scalar_select %p739, %s33, 1
      %s741 = scalar_lea.vmem %s10, %s740
      %p742 = scmp.lt.s32.totalorder %s33, 1
      %s743 = scalar_select %p742, %s33, 1
      %s744 = smul.addr %s743, 8
      %s745 = smul.addr %s744, 8
      %s746 = scalar_lea.vmem %s11, %s745
      %p747 = scmp.lt.s32.totalorder %s33, 1
      %s748 = scalar_select %p747, %s33, 1
      %s749 = scalar_lea.vmem %s12, %s748
      %s750 = smul.u32 2, %s32
      %p751 = scmp.lt.s32.totalorder %s750, 3
      %s752 = scalar_select %p751, %s750, 3
      %s753 = smul.addr %s752, 8
      %s754 = scalar_lea.vmem %s17, %s753
      %s755 = smul.u32 2, %s32
      %p756 = scmp.eq.s32.totalorder %s33, 0
      // Predicated region
      $region89: #{block_dct_transformer_encoder.3} parent=87 // pred_check
        %p757 = pneg %p756
      $region90: #{block_dct_transformer_encoder.3} parent=87 // pred_check_branch
        %759 = sbr.rel (%p757) target = $region92
      $region91: #{block_dct_transformer_encoder.3} parent=87 // pred_region
        %v760 = vld [vmem:[%s704] sm:$0xff]
        %v761 = vld [vmem:[%s704 + $0x8] sm:$0xff]
        %vm762 = vcmask 261120
        %763 = vst.msk [vmem:[#allocation2] sm:$0xff] %vm762, %v760
        %764 = vst.msk [vmem:[#allocation2 + $0x8] sm:$0xff] %vm762, %v761
      $region92: #{block_dct_transformer_encoder.3} parent=87 // pred_fallthru
        _
      %v765 = vld [vmem:[#allocation2] sm:$0xff]
      %v766 = vld [vmem:[#allocation2 + $0x8] sm:$0xff]
      %v767 = vld [vmem:[%s708] sm:$0x1]
      %v768 = vld [vmem:[%s711] sm:$0x1]
      %vm769 = vcmask 261120
      %v770 = vsel %vm769, %v765, 0.0
      %771 = vadd.xlane.f32.xlu0 %v770
      %v772 = vpop.xlane.xlu0 %771
      %v773 = vsel %vm769, %v766, 0.0
      %774 = vadd.xlane.f32.xlu0 %v773
      %v775 = vpop.xlane.xlu0 %774
      %v776 = vrcp.pop 32.0
      %v777 = vmul.f32 %v772, %v776
      %v778 = vmul.f32 %v775, %v776
      %v779 = vsub.f32 %v765, %v777
      %v780 = vsub.f32 %v766, %v778
      %v781 = vmul.f32 %v779, %v779
      %v782 = vmul.f32 %v780, %v780
      %v783 = vsel %vm769, %v781, 0.0
      %784 = vadd.xlane.f32.xlu0 %v783
      %v785 = vpop.xlane.xlu0 %784
      %v786 = vsel %vm769, %v782, 0.0
      %787 = vadd.xlane.f32.xlu0 %v786
      %v788 = vpop.xlane.xlu0 %787
      %v789 = vmul.f32 %v785, %v776
      %v790 = vmul.f32 %v788, %v776
      %v791 = vadd.f32 %v789, 1e-05
      %v792 = vadd.f32 %v790, 1e-05
      %v793 = vrsqrt.pop %v791
      %v794 = vrsqrt.pop %v792
      %v795 = vmul.f32 %v779, %v793
      %v796 = vmul.f32 %v780, %v794
      %v798 = vlaneseq
      %v799 = vshrl.u32 %v798, 7
      %v800 = vsub.s32 0, %v799
      %v801 = vrot.slane %v767, %v800
      %v803 = vmul.f32 %v795, %v801
      %v804 = vmul.f32 %v796, %v801
      %v806 = vlaneseq
      %v807 = vshrl.u32 %v806, 7
      %v808 = vsub.s32 0, %v807
      %v809 = vrot.slane %v768, %v808
      %v811 = vadd.f32 %v803, %v809
      %v812 = vadd.f32 %v804, %v809
      %v813 = vld [vmem:[%s716] sm:$0xff]
      %v814 = vld [vmem:[%s716 + $0x8] sm:$0xff]
      %v815 = vld [vmem:[%s716 + $0x10] sm:$0xff]
      %v816 = vld [vmem:[%s716 + $0x18] sm:$0xff]
      %v817 = vld [vmem:[%s719] sm:$0x1]
      %v819 = vlaneseq
      %v820 = vshrl.u32 %v819, 7
      %v821 = vsub.s32 0, %v820
      %v822 = vrot.slane %v817, %v821
      %v825 = vsel %vm769, %v811, 0
      %v828 = vsel %vm769, %v812, 0
      %830 = vmatprep.subr.mxu0 0.0
      %831 = vmatpush1.msra.mxu0 0.0
      %832 = vmatprep.subr.mxu0 0.0
      %833 = vmatpush1.msra.mxu0 0.0
      %834 = vmatprep.subr.mxu0 0.0
      %835 = vmatpush1.msra.mxu0 0.0
      %836 = vmatprep.subr.mxu0 0.0
      %837 = vmatpush1.msra.mxu0 0.0
      %838 = vmatprep.subr.mxu0 0.0
      %839 = vmatpush1.msra.mxu0 0.0
      %840 = vmatprep.subr.mxu0 0.0
      %841 = vmatpush1.msra.mxu0 0.0
      %842 = vmatprep.subr.mxu0 0.0
      %843 = vmatpush1.msra.mxu0 0.0
      %844 = vmatprep.subr.mxu0 0.0
      %845 = vmatpush1.msra.mxu0 0.0
      %846 = vmatprep.subr.mxu0 0.0
      %847 = vmatpush1.msra.mxu0 0.0
      %848 = vmatprep.subr.mxu0 0.0
      %849 = vmatpush1.msra.mxu0 0.0
      %850 = vmatprep.subr.mxu0 0.0
      %851 = vmatpush1.msra.mxu0 0.0
      %852 = vmatprep.subr.mxu0 0.0
      %853 = vmatpush1.msra.mxu0 0.0
      %854 = vmatprep.subr.mxu0 0.0
      %855 = vmatpush1.msra.mxu0 %v816
      %856 = vmatprep.subr.mxu0 0.0
      %857 = vmatpush1.msra.mxu0 %v815
      %858 = vmatprep.subr.mxu0 0.0
      %859 = vmatpush1.msra.mxu0 %v814
      %860 = vmatprep.subr.mxu0 0.0
      %861 = vmatpush1.msra.mxu0 %v813
      %862 = vmatprep.subr.mxu0 0.0
      %863 = vmatpush2.msra.mxu0 0.0
      %864 = vmatprep.subr.mxu0 0.0
      %865 = vmatpush2.msra.mxu0 0.0
      %866 = vmatprep.subr.mxu0 0.0
      %867 = vmatpush2.msra.mxu0 0.0
      %868 = vmatprep.subr.mxu0 0.0
      %869 = vmatpush2.msra.mxu0 0.0
      %870 = vmatprep.subr.mxu0 0.0
      %871 = vmatpush2.msra.mxu0 0.0
      %872 = vmatprep.subr.mxu0 0.0
      %873 = vmatpush2.msra.mxu0 0.0
      %874 = vmatprep.subr.mxu0 0.0
      %875 = vmatpush2.msra.mxu0 0.0
      %876 = vmatprep.subr.mxu0 0.0
      %877 = vmatpush2.msra.mxu0 0.0
      %878 = vmatprep.subr.mxu0 0.0
      %879 = vmatpush2.msra.mxu0 0.0
      %880 = vmatprep.subr.mxu0 0.0
      %881 = vmatpush2.msra.mxu0 0.0
      %882 = vmatprep.subr.mxu0 0.0
      %883 = vmatpush2.msra.mxu0 0.0
      %884 = vmatprep.subr.mxu0 0.0
      %885 = vmatpush2.msra.mxu0 0.0
      %886 = vmatprep.subr.mxu0 0.0
      %887 = vmatpush2.msra.mxu0 0.0
      %888 = vmatprep.subr.mxu0 0.0
      %889 = vmatpush2.msra.mxu0 0.0
      %890 = vmatprep.subr.mxu0 0.0
      %891 = vmatpush2.msra.mxu0 0.0
      %892 = vmatprep.subr.mxu0 0.0
      %893 = vmatpush2.msra.mxu0 0.0
      %894 = vmatprep.mubr.f32.mxu0 0.0
      %895 = vmatmul.mubr.f32.gmra.mxu0 %v825
      %v896 = vpop.f32.mrf.mxu0
      %v897 = vadd.f32 %v822, %v896
      %v898 = vpop.f32.mrf.mxu0
      %899 = vmatprep.mubr.f32.mxu0 0.0
      %900 = vmatmul.mubr.f32.gmra.mxu0 %v828
      %v901 = vpop.f32.mrf.mxu0
      %v902 = vadd.f32 %v822, %v901
      %v903 = vpop.f32.mrf.mxu0
      %904 = vdwg.mxu0
      %v905 = vmul.f32 %v897, 0.25
      %v906 = vmul.f32 %v902, 0.25
      %909 = vrot.lane.b32.xlu0 %v897, 96
      %v910 = vpop.permute.xlu0 %909
      %911 = vrot.lane.b32.xlu0 %v902, 96
      %v912 = vpop.permute.xlu0 %911
      %vm913 = vcmask 130048
      %v915 = vsel %vm913, %v905, 0
      %v918 = vsel %vm913, %v906, 0
      %v920 = vsel %vm913, %v910, 0
      %v922 = vsel %vm913, %v912, 0
      %924 = vmatprep.subr.mxu0 0.0
      %925 = vmatpush1.xpose.msra.mxu0 0.0
      %926 = vmatprep.subr.mxu0 0.0
      %927 = vmatpush1.xpose.msra.mxu0 0.0
      %928 = vmatprep.subr.mxu0 0.0
      %929 = vmatpush1.xpose.msra.mxu0 0.0
      %930 = vmatprep.subr.mxu0 0.0
      %931 = vmatpush1.xpose.msra.mxu0 0.0
      %932 = vmatprep.subr.mxu0 0.0
      %933 = vmatpush1.xpose.msra.mxu0 0.0
      %934 = vmatprep.subr.mxu0 0.0
      %935 = vmatpush1.xpose.msra.mxu0 0.0
      %936 = vmatprep.subr.mxu0 0.0
      %937 = vmatpush1.xpose.msra.mxu0 0.0
      %938 = vmatprep.subr.mxu0 0.0
      %939 = vmatpush1.xpose.msra.mxu0 0.0
      %940 = vmatprep.subr.mxu0 0.0
      %941 = vmatpush1.xpose.msra.mxu0 0.0
      %942 = vmatprep.subr.mxu0 0.0
      %943 = vmatpush1.xpose.msra.mxu0 0.0
      %944 = vmatprep.subr.mxu0 0.0
      %945 = vmatpush1.xpose.msra.mxu0 0.0
      %946 = vmatprep.subr.mxu0 0.0
      %947 = vmatpush1.xpose.msra.mxu0 0.0
      %948 = vmatprep.subr.mxu0 0.0
      %949 = vmatpush1.xpose.msra.mxu0 0.0
      %950 = vmatprep.subr.mxu0 0.0
      %951 = vmatpush1.xpose.msra.mxu0 0.0
      %952 = vmatprep.subr.mxu0 0.0
      %953 = vmatpush1.xpose.msra.mxu0 %v922
      %954 = vmatprep.subr.mxu0 0.0
      %955 = vmatpush1.xpose.msra.mxu0 %v920
      %956 = vmatprep.subr.mxu0 0.0
      %957 = vmatpush2.xpose.msra.mxu0 0.0
      %958 = vmatprep.subr.mxu0 0.0
      %959 = vmatpush2.xpose.msra.mxu0 0.0
      %960 = vmatprep.subr.mxu0 0.0
      %961 = vmatpush2.xpose.msra.mxu0 0.0
      %962 = vmatprep.subr.mxu0 0.0
      %963 = vmatpush2.xpose.msra.mxu0 0.0
      %964 = vmatprep.subr.mxu0 0.0
      %965 = vmatpush2.xpose.msra.mxu0 0.0
      %966 = vmatprep.subr.mxu0 0.0
      %967 = vmatpush2.xpose.msra.mxu0 0.0
      %968 = vmatprep.subr.mxu0 0.0
      %969 = vmatpush2.xpose.msra.mxu0 0.0
      %970 = vmatprep.subr.mxu0 0.0
      %971 = vmatpush2.xpose.msra.mxu0 0.0
      %972 = vmatprep.subr.mxu0 0.0
      %973 = vmatpush2.xpose.msra.mxu0 0.0
      %974 = vmatprep.subr.mxu0 0.0
      %975 = vmatpush2.xpose.msra.mxu0 0.0
      %976 = vmatprep.subr.mxu0 0.0
      %977 = vmatpush2.xpose.msra.mxu0 0.0
      %978 = vmatprep.subr.mxu0 0.0
      %979 = vmatpush2.xpose.msra.mxu0 0.0
      %980 = vmatprep.subr.mxu0 0.0
      %981 = vmatpush2.xpose.msra.mxu0 0.0
      %982 = vmatprep.subr.mxu0 0.0
      %983 = vmatpush2.xpose.msra.mxu0 0.0
      %984 = vmatprep.subr.mxu0 0.0
      %985 = vmatpush2.xpose.msra.mxu0 0.0
      %986 = vmatprep.subr.mxu0 0.0
      %987 = vmatpush2.xpose.msra.mxu0 0.0
      %988 = vmatprep.mubr.f32.mxu0 0.0
      %989 = vmatmul.mubr.f32.gmra.mxu0 %v915
      %v990 = vpop.f32.mrf.mxu0
      %v991 = vadd.f32 0.0, %v990
      %v992 = vpop.f32.mrf.mxu0
      %993 = vmatprep.mubr.f32.mxu0 0.0
      %994 = vmatmul.mubr.f32.gmra.mxu0 %v918
      %v995 = vpop.f32.mrf.mxu0
      %v996 = vadd.f32 0.0, %v995
      %v997 = vpop.f32.mrf.mxu0
      %998 = vdwg.mxu0
      %v999 = vsel %vm913, %v991, -inf
      %1000 = vmax.xlane.f32.xlu0 %v999
      %v1001 = vpop.xlane.xlu0 %1000
      %v1002 = vsel %vm913, %v996, -inf
      %1003 = vmax.xlane.f32.xlu0 %v1002
      %v1004 = vpop.xlane.xlu0 %1003
      %v1005 = vsub.f32 %v991, %v1001
      %v1006 = vsub.f32 %v996, %v1004
      %v1007 = vmul.f32 %v1005, 1.442695
      %v1008 = vpow.pop %v1007
      %v1009 = vmul.f32 %v1006, 1.442695
      %v1010 = vpow.pop %v1009
      %v1011 = vsel %vm913, %v1008, 0.0
      %1012 = vadd.xlane.f32.xlu0 %v1011
      %v1013 = vpop.xlane.xlu0 %1012
      %v1014 = vsel %vm913, %v1010, 0.0
      %1015 = vadd.xlane.f32.xlu0 %v1014
      %v1016 = vpop.xlane.xlu0 %1015
      %v1017 = vrcp.pop %v1013
      %v1018 = vrcp.pop %v1016
      %v1019 = vmul.f32 %v1008, %v1017
      %v1020 = vmul.f32 %v1010, %v1018
      %1021 = vrot.lane.b32.xlu0 %v897, 64
      %v1022 = vpop.permute.xlu0 %1021
      %1023 = vrot.lane.b32.xlu0 %v902, 64
      %v1024 = vpop.permute.xlu0 %1023
      %v1028 = vsel %vm913, %v1019, 0
      %v1031 = vsel %vm913, %v1020, 0
      %1033 = vmatprep.subr.mxu0 0.0
      %1034 = vmatpush1.msra.mxu0 0.0
      %1035 = vmatprep.subr.mxu0 0.0
      %1036 = vmatpush1.msra.mxu0 0.0
      %1037 = vmatprep.subr.mxu0 0.0
      %1038 = vmatpush1.msra.mxu0 0.0
      %1039 = vmatprep.subr.mxu0 0.0
      %1040 = vmatpush1.msra.mxu0 0.0
      %1041 = vmatprep.subr.mxu0 0.0
      %1042 = vmatpush1.msra.mxu0 0.0
      %1043 = vmatprep.subr.mxu0 0.0
      %1044 = vmatpush1.msra.mxu0 0.0
      %1045 = vmatprep.subr.mxu0 0.0
      %1046 = vmatpush1.msra.mxu0 0.0
      %1047 = vmatprep.subr.mxu0 0.0
      %1048 = vmatpush1.msra.mxu0 0.0
      %1049 = vmatprep.subr.mxu0 0.0
      %1050 = vmatpush1.msra.mxu0 0.0
      %1051 = vmatprep.subr.mxu0 0.0
      %1052 = vmatpush1.msra.mxu0 0.0
      %1053 = vmatprep.subr.mxu0 0.0
      %1054 = vmatpush1.msra.mxu0 0.0
      %1055 = vmatprep.subr.mxu0 0.0
      %1056 = vmatpush1.msra.mxu0 0.0
      %1057 = vmatprep.subr.mxu0 0.0
      %1058 = vmatpush1.msra.mxu0 0.0
      %1059 = vmatprep.subr.mxu0 0.0
      %1060 = vmatpush1.msra.mxu0 0.0
      %1061 = vmatprep.subr.mxu0 0.0
      %1062 = vmatpush1.msra.mxu0 %v1024
      %1063 = vmatprep.subr.mxu0 0.0
      %1064 = vmatpush1.msra.mxu0 %v1022
      %1065 = vmatprep.subr.mxu0 0.0
      %1066 = vmatpush2.msra.mxu0 0.0
      %1067 = vmatprep.subr.mxu0 0.0
      %1068 = vmatpush2.msra.mxu0 0.0
      %1069 = vmatprep.subr.mxu0 0.0
      %1070 = vmatpush2.msra.mxu0 0.0
      %1071 = vmatprep.subr.mxu0 0.0
      %1072 = vmatpush2.msra.mxu0 0.0
      %1073 = vmatprep.subr.mxu0 0.0
      %1074 = vmatpush2.msra.mxu0 0.0
      %1075 = vmatprep.subr.mxu0 0.0
      %1076 = vmatpush2.msra.mxu0 0.0
      %1077 = vmatprep.subr.mxu0 0.0
      %1078 = vmatpush2.msra.mxu0 0.0
      %1079 = vmatprep.subr.mxu0 0.0
      %1080 = vmatpush2.msra.mxu0 0.0
      %1081 = vmatprep.subr.mxu0 0.0
      %1082 = vmatpush2.msra.mxu0 0.0
      %1083 = vmatprep.subr.mxu0 0.0
      %1084 = vmatpush2.msra.mxu0 0.0
      %1085 = vmatprep.subr.mxu0 0.0
      %1086 = vmatpush2.msra.mxu0 0.0
      %1087 = vmatprep.subr.mxu0 0.0
      %1088 = vmatpush2.msra.mxu0 0.0
      %1089 = vmatprep.subr.mxu0 0.0
      %1090 = vmatpush2.msra.mxu0 0.0
      %1091 = vmatprep.subr.mxu0 0.0
      %1092 = vmatpush2.msra.mxu0 0.0
      %1093 = vmatprep.subr.mxu0 0.0
      %1094 = vmatpush2.msra.mxu0 0.0
      %1095 = vmatprep.subr.mxu0 0.0
      %1096 = vmatpush2.msra.mxu0 0.0
      %1097 = vmatprep.mubr.f32.mxu0 0.0
      %1098 = vmatmul.mubr.f32.gmra.mxu0 %v1028
      %v1099 = vpop.f32.mrf.mxu0
      %v1100 = vadd.f32 0.0, %v1099
      %v1101 = vpop.f32.mrf.mxu0
      %1102 = vmatprep.mubr.f32.mxu0 0.0
      %1103 = vmatmul.mubr.f32.gmra.mxu0 %v1031
      %v1104 = vpop.f32.mrf.mxu0
      %v1105 = vadd.f32 0.0, %v1104
      %v1106 = vpop.f32.mrf.mxu0
      %1107 = vdwg.mxu0
      %1108 = vrot.lane.b32.xlu0 %v905, 112
      %v1109 = vpop.permute.xlu0 %1108
      %1110 = vrot.lane.b32.xlu0 %v906, 112
      %v1111 = vpop.permute.xlu0 %1110
      %1112 = vrot.lane.b32.xlu0 %v897, 80
      %v1113 = vpop.permute.xlu0 %1112
      %1114 = vrot.lane.b32.xlu0 %v902, 80
      %v1115 = vpop.permute.xlu0 %1114
      %v1116 = vsel %vm913, %v1109, 0
      %v1118 = vsel %vm913, %v1111, 0
      %v1120 = vsel %vm913, %v1113, 0
      %v1122 = vsel %vm913, %v1115, 0
      %1124 = vmatprep.subr.mxu0 0.0
      %1125 = vmatpush1.xpose.msra.mxu0 0.0
      %1126 = vmatprep.subr.mxu0 0.0
      %1127 = vmatpush1.xpose.msra.mxu0 0.0
      %1128 = vmatprep.subr.mxu0 0.0
      %1129 = vmatpush1.xpose.msra.mxu0 0.0
      %1130 = vmatprep.subr.mxu0 0.0
      %1131 = vmatpush1.xpose.msra.mxu0 0.0
      %1132 = vmatprep.subr.mxu0 0.0
      %1133 = vmatpush1.xpose.msra.mxu0 0.0
      %1134 = vmatprep.subr.mxu0 0.0
      %1135 = vmatpush1.xpose.msra.mxu0 0.0
      %1136 = vmatprep.subr.mxu0 0.0
      %1137 = vmatpush1.xpose.msra.mxu0 0.0
      %1138 = vmatprep.subr.mxu0 0.0
      %1139 = vmatpush1.xpose.msra.mxu0 0.0
      %1140 = vmatprep.subr.mxu0 0.0
      %1141 = vmatpush1.xpose.msra.mxu0 0.0
      %1142 = vmatprep.subr.mxu0 0.0
      %1143 = vmatpush1.xpose.msra.mxu0 0.0
      %1144 = vmatprep.subr.mxu0 0.0
      %1145 = vmatpush1.xpose.msra.mxu0 0.0
      %1146 = vmatprep.subr.mxu0 0.0
      %1147 = vmatpush1.xpose.msra.mxu0 0.0
      %1148 = vmatprep.subr.mxu0 0.0
      %1149 = vmatpush1.xpose.msra.mxu0 0.0
      %1150 = vmatprep.subr.mxu0 0.0
      %1151 = vmatpush1.xpose.msra.mxu0 0.0
      %1152 = vmatprep.subr.mxu0 0.0
      %1153 = vmatpush1.xpose.msra.mxu0 %v1122
      %1154 = vmatprep.subr.mxu0 0.0
      %1155 = vmatpush1.xpose.msra.mxu0 %v1120
      %1156 = vmatprep.subr.mxu0 0.0
      %1157 = vmatpush2.xpose.msra.mxu0 0.0
      %1158 = vmatprep.subr.mxu0 0.0
      %1159 = vmatpush2.xpose.msra.mxu0 0.0
      %1160 = vmatprep.subr.mxu0 0.0
      %1161 = vmatpush2.xpose.msra.mxu0 0.0
      %1162 = vmatprep.subr.mxu0 0.0
      %1163 = vmatpush2.xpose.msra.mxu0 0.0
      %1164 = vmatprep.subr.mxu0 0.0
      %1165 = vmatpush2.xpose.msra.mxu0 0.0
      %1166 = vmatprep.subr.mxu0 0.0
      %1167 = vmatpush2.xpose.msra.mxu0 0.0
      %1168 = vmatprep.subr.mxu0 0.0
      %1169 = vmatpush2.xpose.msra.mxu0 0.0
      %1170 = vmatprep.subr.mxu0 0.0
      %1171 = vmatpush2.xpose.msra.mxu0 0.0
      %1172 = vmatprep.subr.mxu0 0.0
      %1173 = vmatpush2.xpose.msra.mxu0 0.0
      %1174 = vmatprep.subr.mxu0 0.0
      %1175 = vmatpush2.xpose.msra.mxu0 0.0
      %1176 = vmatprep.subr.mxu0 0.0
      %1177 = vmatpush2.xpose.msra.mxu0 0.0
      %1178 = vmatprep.subr.mxu0 0.0
      %1179 = vmatpush2.xpose.msra.mxu0 0.0
      %1180 = vmatprep.subr.mxu0 0.0
      %1181 = vmatpush2.xpose.msra.mxu0 0.0
      %1182 = vmatprep.subr.mxu0 0.0
      %1183 = vmatpush2.xpose.msra.mxu0 0.0
      %1184 = vmatprep.subr.mxu0 0.0
      %1185 = vmatpush2.xpose.msra.mxu0 0.0
      %1186 = vmatprep.subr.mxu0 0.0
      %1187 = vmatpush2.xpose.msra.mxu0 0.0
      %1188 = vmatprep.mubr.f32.mxu0 0.0
      %1189 = vmatmul.mubr.f32.gmra.mxu0 %v1116
      %v1190 = vpop.f32.mrf.mxu0
      %v1191 = vadd.f32 0.0, %v1190
      %v1192 = vpop.f32.mrf.mxu0
      %1193 = vmatprep.mubr.f32.mxu0 0.0
      %1194 = vmatmul.mubr.f32.gmra.mxu0 %v1118
      %v1195 = vpop.f32.mrf.mxu0
      %v1196 = vadd.f32 0.0, %v1195
      %v1197 = vpop.f32.mrf.mxu0
      %1198 = vdwg.mxu0
      %v1199 = vsel %vm913, %v1191, -inf
      %1200 = vmax.xlane.f32.xlu0 %v1199
      %v1201 = vpop.xlane.xlu0 %1200
      %v1202 = vsel %vm913, %v1196, -inf
      %1203 = vmax.xlane.f32.xlu0 %v1202
      %v1204 = vpop.xlane.xlu0 %1203
      %v1205 = vsub.f32 %v1191, %v1201
      %v1206 = vsub.f32 %v1196, %v1204
      %v1207 = vmul.f32 %v1205, 1.442695
      %v1208 = vpow.pop %v1207
      %v1209 = vmul.f32 %v1206, 1.442695
      %v1210 = vpow.pop %v1209
      %v1211 = vsel %vm913, %v1208, 0.0
      %1212 = vadd.xlane.f32.xlu0 %v1211
      %v1213 = vpop.xlane.xlu0 %1212
      %v1214 = vsel %vm913, %v1210, 0.0
      %1215 = vadd.xlane.f32.xlu0 %v1214
      %v1216 = vpop.xlane.xlu0 %1215
      %v1217 = vrcp.pop %v1213
      %v1218 = vrcp.pop %v1216
      %v1219 = vmul.f32 %v1208, %v1217
      %v1220 = vmul.f32 %v1210, %v1218
      %1221 = vrot.lane.b32.xlu0 %v897, 48
      %v1222 = vpop.permute.xlu0 %1221
      %1223 = vrot.lane.b32.xlu0 %v902, 48
      %v1224 = vpop.permute.xlu0 %1223
      %v1228 = vsel %vm913, %v1219, 0
      %v1231 = vsel %vm913, %v1220, 0
      %1233 = vmatprep.subr.mxu0 0.0
      %1234 = vmatpush1.msra.mxu0 0.0
      %1235 = vmatprep.subr.mxu0 0.0
      %1236 = vmatpush1.msra.mxu0 0.0
      %1237 = vmatprep.subr.mxu0 0.0
      %1238 = vmatpush1.msra.mxu0 0.0
      %1239 = vmatprep.subr.mxu0 0.0
      %1240 = vmatpush1.msra.mxu0 0.0
      %1241 = vmatprep.subr.mxu0 0.0
      %1242 = vmatpush1.msra.mxu0 0.0
      %1243 = vmatprep.subr.mxu0 0.0
      %1244 = vmatpush1.msra.mxu0 0.0
      %1245 = vmatprep.subr.mxu0 0.0
      %1246 = vmatpush1.msra.mxu0 0.0
      %1247 = vmatprep.subr.mxu0 0.0
      %1248 = vmatpush1.msra.mxu0 0.0
      %1249 = vmatprep.subr.mxu0 0.0
      %1250 = vmatpush1.msra.mxu0 0.0
      %1251 = vmatprep.subr.mxu0 0.0
      %1252 = vmatpush1.msra.mxu0 0.0
      %1253 = vmatprep.subr.mxu0 0.0
      %1254 = vmatpush1.msra.mxu0 0.0
      %1255 = vmatprep.subr.mxu0 0.0
      %1256 = vmatpush1.msra.mxu0 0.0
      %1257 = vmatprep.subr.mxu0 0.0
      %1258 = vmatpush1.msra.mxu0 0.0
      %1259 = vmatprep.subr.mxu0 0.0
      %1260 = vmatpush1.msra.mxu0 0.0
      %1261 = vmatprep.subr.mxu0 0.0
      %1262 = vmatpush1.msra.mxu0 %v1224
      %1263 = vmatprep.subr.mxu0 0.0
      %1264 = vmatpush1.msra.mxu0 %v1222
      %1265 = vmatprep.subr.mxu0 0.0
      %1266 = vmatpush2.msra.mxu0 0.0
      %1267 = vmatprep.subr.mxu0 0.0
      %1268 = vmatpush2.msra.mxu0 0.0
      %1269 = vmatprep.subr.mxu0 0.0
      %1270 = vmatpush2.msra.mxu0 0.0
      %1271 = vmatprep.subr.mxu0 0.0
      %1272 = vmatpush2.msra.mxu0 0.0
      %1273 = vmatprep.subr.mxu0 0.0
      %1274 = vmatpush2.msra.mxu0 0.0
      %1275 = vmatprep.subr.mxu0 0.0
      %1276 = vmatpush2.msra.mxu0 0.0
      %1277 = vmatprep.subr.mxu0 0.0
      %1278 = vmatpush2.msra.mxu0 0.0
      %1279 = vmatprep.subr.mxu0 0.0
      %1280 = vmatpush2.msra.mxu0 0.0
      %1281 = vmatprep.subr.mxu0 0.0
      %1282 = vmatpush2.msra.mxu0 0.0
      %1283 = vmatprep.subr.mxu0 0.0
      %1284 = vmatpush2.msra.mxu0 0.0
      %1285 = vmatprep.subr.mxu0 0.0
      %1286 = vmatpush2.msra.mxu0 0.0
      %1287 = vmatprep.subr.mxu0 0.0
      %1288 = vmatpush2.msra.mxu0 0.0
      %1289 = vmatprep.subr.mxu0 0.0
      %1290 = vmatpush2.msra.mxu0 0.0
      %1291 = vmatprep.subr.mxu0 0.0
      %1292 = vmatpush2.msra.mxu0 0.0
      %1293 = vmatprep.subr.mxu0 0.0
      %1294 = vmatpush2.msra.mxu0 0.0
      %1295 = vmatprep.subr.mxu0 0.0
      %1296 = vmatpush2.msra.mxu0 0.0
      %1297 = vmatprep.mubr.f32.mxu0 0.0
      %1298 = vmatmul.mubr.f32.gmra.mxu0 %v1228
      %v1299 = vpop.f32.mrf.mxu0
      %v1300 = vadd.f32 0.0, %v1299
      %v1301 = vpop.f32.mrf.mxu0
      %1302 = vmatprep.mubr.f32.mxu0 0.0
      %1303 = vmatmul.mubr.f32.gmra.mxu0 %v1231
      %v1304 = vpop.f32.mrf.mxu0
      %v1305 = vadd.f32 0.0, %v1304
      %v1306 = vpop.f32.mrf.mxu0
      %1307 = vdwg.mxu0
      %1310 = vrot.lane.b32.xlu0 %v1300, 16
      %v1311 = vpop.permute.xlu0 %1310
      %1312 = vrot.lane.b32.xlu0 %v1305, 16
      %v1313 = vpop.permute.xlu0 %1312
      %v1316 = vsel %vm913, %v1100, %v1311
      %v1317 = vsel %vm913, %v1105, %v1313
      %v1318 = vld [vmem:[%s724] sm:$0xff]
      %v1319 = vld [vmem:[%s724 + $0x8] sm:$0xff]
      %v1320 = vld [vmem:[%s724 + $0x10] sm:$0xff]
      %v1321 = vld [vmem:[%s724 + $0x18] sm:$0xff]
      %v1322 = vld [vmem:[%s727] sm:$0x1]
      %v1324 = vlaneseq
      %v1325 = vshrl.u32 %v1324, 7
      %v1326 = vsub.s32 0, %v1325
      %v1327 = vrot.slane %v1322, %v1326
      %v1330 = vsel %vm769, %v1316, 0
      %v1333 = vsel %vm769, %v1317, 0
      %1335 = vmatprep.subr.mxu0 0.0
      %1336 = vmatpush1.msra.mxu0 0.0
      %1337 = vmatprep.subr.mxu0 0.0
      %1338 = vmatpush1.msra.mxu0 0.0
      %1339 = vmatprep.subr.mxu0 0.0
      %1340 = vmatpush1.msra.mxu0 0.0
      %1341 = vmatprep.subr.mxu0 0.0
      %1342 = vmatpush1.msra.mxu0 0.0
      %1343 = vmatprep.subr.mxu0 0.0
      %1344 = vmatpush1.msra.mxu0 0.0
      %1345 = vmatprep.subr.mxu0 0.0
      %1346 = vmatpush1.msra.mxu0 0.0
      %1347 = vmatprep.subr.mxu0 0.0
      %1348 = vmatpush1.msra.mxu0 0.0
      %1349 = vmatprep.subr.mxu0 0.0
      %1350 = vmatpush1.msra.mxu0 0.0
      %1351 = vmatprep.subr.mxu0 0.0
      %1352 = vmatpush1.msra.mxu0 0.0
      %1353 = vmatprep.subr.mxu0 0.0
      %1354 = vmatpush1.msra.mxu0 0.0
      %1355 = vmatprep.subr.mxu0 0.0
      %1356 = vmatpush1.msra.mxu0 0.0
      %1357 = vmatprep.subr.mxu0 0.0
      %1358 = vmatpush1.msra.mxu0 0.0
      %1359 = vmatprep.subr.mxu0 0.0
      %1360 = vmatpush1.msra.mxu0 %v1321
      %1361 = vmatprep.subr.mxu0 0.0
      %1362 = vmatpush1.msra.mxu0 %v1320
      %1363 = vmatprep.subr.mxu0 0.0
      %1364 = vmatpush1.msra.mxu0 %v1319
      %1365 = vmatprep.subr.mxu0 0.0
      %1366 = vmatpush1.msra.mxu0 %v1318
      %1367 = vmatprep.subr.mxu0 0.0
      %1368 = vmatpush2.msra.mxu0 0.0
      %1369 = vmatprep.subr.mxu0 0.0
      %1370 = vmatpush2.msra.mxu0 0.0
      %1371 = vmatprep.subr.mxu0 0.0
      %1372 = vmatpush2.msra.mxu0 0.0
      %1373 = vmatprep.subr.mxu0 0.0
      %1374 = vmatpush2.msra.mxu0 0.0
      %1375 = vmatprep.subr.mxu0 0.0
      %1376 = vmatpush2.msra.mxu0 0.0
      %1377 = vmatprep.subr.mxu0 0.0
      %1378 = vmatpush2.msra.mxu0 0.0
      %1379 = vmatprep.subr.mxu0 0.0
      %1380 = vmatpush2.msra.mxu0 0.0
      %1381 = vmatprep.subr.mxu0 0.0
      %1382 = vmatpush2.msra.mxu0 0.0
      %1383 = vmatprep.subr.mxu0 0.0
      %1384 = vmatpush2.msra.mxu0 0.0
      %1385 = vmatprep.subr.mxu0 0.0
      %1386 = vmatpush2.msra.mxu0 0.0
      %1387 = vmatprep.subr.mxu0 0.0
      %1388 = vmatpush2.msra.mxu0 0.0
      %1389 = vmatprep.subr.mxu0 0.0
      %1390 = vmatpush2.msra.mxu0 0.0
      %1391 = vmatprep.subr.mxu0 0.0
      %1392 = vmatpush2.msra.mxu0 0.0
      %1393 = vmatprep.subr.mxu0 0.0
      %1394 = vmatpush2.msra.mxu0 0.0
      %1395 = vmatprep.subr.mxu0 0.0
      %1396 = vmatpush2.msra.mxu0 0.0
      %1397 = vmatprep.subr.mxu0 0.0
      %1398 = vmatpush2.msra.mxu0 0.0
      %1399 = vmatprep.mubr.f32.mxu0 0.0
      %1400 = vmatmul.mubr.f32.gmra.mxu0 %v1330
      %v1401 = vpop.f32.mrf.mxu0
      %v1402 = vadd.f32 %v1327, %v1401
      %v1403 = vpop.f32.mrf.mxu0
      %1404 = vmatprep.mubr.f32.mxu0 0.0
      %1405 = vmatmul.mubr.f32.gmra.mxu0 %v1333
      %v1406 = vpop.f32.mrf.mxu0
      %v1407 = vadd.f32 %v1327, %v1406
      %v1408 = vpop.f32.mrf.mxu0
      %1409 = vdwg.mxu0
      %v1410 = vadd.f32 %v765, %v1402
      %v1411 = vadd.f32 %v766, %v1407
      %v1412 = vld [vmem:[%s730] sm:$0x1]
      %v1413 = vld [vmem:[%s733] sm:$0x1]
      %v1414 = vsel %vm769, %v1410, 0.0
      %1415 = vadd.xlane.f32.xlu0 %v1414
      %v1416 = vpop.xlane.xlu0 %1415
      %v1417 = vsel %vm769, %v1411, 0.0
      %1418 = vadd.xlane.f32.xlu0 %v1417
      %v1419 = vpop.xlane.xlu0 %1418
      %v1420 = vmul.f32 %v1416, %v776
      %v1421 = vmul.f32 %v1419, %v776
      %v1422 = vsub.f32 %v1410, %v1420
      %v1423 = vsub.f32 %v1411, %v1421
      %v1424 = vmul.f32 %v1422, %v1422
      %v1425 = vmul.f32 %v1423, %v1423
      %v1426 = vsel %vm769, %v1424, 0.0
      %1427 = vadd.xlane.f32.xlu0 %v1426
      %v1428 = vpop.xlane.xlu0 %1427
      %v1429 = vsel %vm769, %v1425, 0.0
      %1430 = vadd.xlane.f32.xlu0 %v1429
      %v1431 = vpop.xlane.xlu0 %1430
      %v1432 = vmul.f32 %v1428, %v776
      %v1433 = vmul.f32 %v1431, %v776
      %v1434 = vadd.f32 %v1432, 1e-05
      %v1435 = vadd.f32 %v1433, 1e-05
      %v1436 = vrsqrt.pop %v1434
      %v1437 = vrsqrt.pop %v1435
      %v1438 = vmul.f32 %v1422, %v1436
      %v1439 = vmul.f32 %v1423, %v1437
      %v1441 = vlaneseq
      %v1442 = vshrl.u32 %v1441, 7
      %v1443 = vsub.s32 0, %v1442
      %v1444 = vrot.slane %v1412, %v1443
      %v1446 = vmul.f32 %v1438, %v1444
      %v1447 = vmul.f32 %v1439, %v1444
      %v1449 = vlaneseq
      %v1450 = vshrl.u32 %v1449, 7
      %v1451 = vsub.s32 0, %v1450
      %v1452 = vrot.slane %v1413, %v1451
      %v1454 = vadd.f32 %v1446, %v1452
      %v1455 = vadd.f32 %v1447, %v1452
      %v1456 = vld [vmem:[%s738] sm:$0xff]
      %v1457 = vld [vmem:[%s738 + $0x8] sm:$0xff]
      %v1458 = vld [vmem:[%s738 + $0x10] sm:$0xff]
      %v1459 = vld [vmem:[%s738 + $0x18] sm:$0xff]
      %v1460 = vld [vmem:[%s741] sm:$0x1]
      %v1462 = vlaneseq
      %v1463 = vshrl.u32 %v1462, 7
      %v1464 = vsub.s32 0, %v1463
      %v1465 = vrot.slane %v1460, %v1464
      %v1468 = vsel %vm769, %v1454, 0
      %v1471 = vsel %vm769, %v1455, 0
      %1473 = vmatprep.subr.mxu0 0.0
      %1474 = vmatpush1.msra.mxu0 0.0
      %1475 = vmatprep.subr.mxu0 0.0
      %1476 = vmatpush1.msra.mxu0 0.0
      %1477 = vmatprep.subr.mxu0 0.0
      %1478 = vmatpush1.msra.mxu0 0.0
      %1479 = vmatprep.subr.mxu0 0.0
      %1480 = vmatpush1.msra.mxu0 0.0
      %1481 = vmatprep.subr.mxu0 0.0
      %1482 = vmatpush1.msra.mxu0 0.0
      %1483 = vmatprep.subr.mxu0 0.0
      %1484 = vmatpush1.msra.mxu0 0.0
      %1485 = vmatprep.subr.mxu0 0.0
      %1486 = vmatpush1.msra.mxu0 0.0
      %1487 = vmatprep.subr.mxu0 0.0
      %1488 = vmatpush1.msra.mxu0 0.0
      %1489 = vmatprep.subr.mxu0 0.0
      %1490 = vmatpush1.msra.mxu0 0.0
      %1491 = vmatprep.subr.mxu0 0.0
      %1492 = vmatpush1.msra.mxu0 0.0
      %1493 = vmatprep.subr.mxu0 0.0
      %1494 = vmatpush1.msra.mxu0 0.0
      %1495 = vmatprep.subr.mxu0 0.0
      %1496 = vmatpush1.msra.mxu0 0.0
      %1497 = vmatprep.subr.mxu0 0.0
      %1498 = vmatpush1.msra.mxu0 %v1459
      %1499 = vmatprep.subr.mxu0 0.0
      %1500 = vmatpush1.msra.mxu0 %v1458
      %1501 = vmatprep.subr.mxu0 0.0
      %1502 = vmatpush1.msra.mxu0 %v1457
      %1503 = vmatprep.subr.mxu0 0.0
      %1504 = vmatpush1.msra.mxu0 %v1456
      %1505 = vmatprep.subr.mxu0 0.0
      %1506 = vmatpush2.msra.mxu0 0.0
      %1507 = vmatprep.subr.mxu0 0.0
      %1508 = vmatpush2.msra.mxu0 0.0
      %1509 = vmatprep.subr.mxu0 0.0
      %1510 = vmatpush2.msra.mxu0 0.0
      %1511 = vmatprep.subr.mxu0 0.0
      %1512 = vmatpush2.msra.mxu0 0.0
      %1513 = vmatprep.subr.mxu0 0.0
      %1514 = vmatpush2.msra.mxu0 0.0
      %1515 = vmatprep.subr.mxu0 0.0
      %1516 = vmatpush2.msra.mxu0 0.0
      %1517 = vmatprep.subr.mxu0 0.0
      %1518 = vmatpush2.msra.mxu0 0.0
      %1519 = vmatprep.subr.mxu0 0.0
      %1520 = vmatpush2.msra.mxu0 0.0
      %1521 = vmatprep.subr.mxu0 0.0
      %1522 = vmatpush2.msra.mxu0 0.0
      %1523 = vmatprep.subr.mxu0 0.0
      %1524 = vmatpush2.msra.mxu0 0.0
      %1525 = vmatprep.subr.mxu0 0.0
      %1526 = vmatpush2.msra.mxu0 0.0
      %1527 = vmatprep.subr.mxu0 0.0
      %1528 = vmatpush2.msra.mxu0 0.0
      %1529 = vmatprep.subr.mxu0 0.0
      %1530 = vmatpush2.msra.mxu0 0.0
      %1531 = vmatprep.subr.mxu0 0.0
      %1532 = vmatpush2.msra.mxu0 0.0
      %1533 = vmatprep.subr.mxu0 0.0
      %1534 = vmatpush2.msra.mxu0 0.0
      %1535 = vmatprep.subr.mxu0 0.0
      %1536 = vmatpush2.msra.mxu0 0.0
      %1537 = vmatprep.mubr.f32.mxu0 0.0
      %1538 = vmatmul.mubr.f32.gmra.mxu0 %v1468
      %v1539 = vpop.f32.mrf.mxu0
      %v1540 = vadd.f32 %v1465, %v1539
      %v1541 = vpop.f32.mrf.mxu0
      %1542 = vmatprep.mubr.f32.mxu0 0.0
      %1543 = vmatmul.mubr.f32.gmra.mxu0 %v1471
      %v1544 = vpop.f32.mrf.mxu0
      %v1545 = vadd.f32 %v1465, %v1544
      %v1546 = vpop.f32.mrf.mxu0
      %1547 = vdwg.mxu0
      %v1548 = vxor.u32 %v1540, 2147483648
      %v1549 = vxor.u32 %v1545, 2147483648
      %v1550 = vmul.f32 %v1548, 1.442695
      %v1551 = vpow.pop %v1550
      %v1552 = vmul.f32 %v1549, 1.442695
      %v1553 = vpow.pop %v1552
      %v1554 = vadd.f32 %v1551, 1.0
      %v1555 = vadd.f32 %v1553, 1.0
      %v1556 = vrcp.pop %v1554
      %v1557 = vmul.f32 1.0, %v1556
      %v1558 = vrcp.pop %v1555
      %v1559 = vmul.f32 1.0, %v1558
      %v1560 = vmul.f32 %v1540, %v1557
      %v1561 = vmul.f32 %v1545, %v1559
      %1564 = vrot.lane.b32.xlu0 %v1540, 64
      %v1565 = vpop.permute.xlu0 %1564
      %1566 = vrot.lane.b32.xlu0 %v1545, 64
      %v1567 = vpop.permute.xlu0 %1566
      %v1570 = vmul.f32 %v1560, %v1565
      %v1571 = vmul.f32 %v1561, %v1567
      %v1572 = vld [vmem:[%s746] sm:$0xff]
      %v1573 = vld [vmem:[%s746 + $0x8] sm:$0xff]
      %v1574 = vld [vmem:[%s746 + $0x10] sm:$0xff]
      %v1575 = vld [vmem:[%s746 + $0x18] sm:$0xff]
      %v1576 = vld [vmem:[%s746 + $0x20] sm:$0xff]
      %v1577 = vld [vmem:[%s746 + $0x28] sm:$0xff]
      %v1578 = vld [vmem:[%s746 + $0x30] sm:$0xff]
      %v1579 = vld [vmem:[%s746 + $0x38] sm:$0xff]
      %v1580 = vld [vmem:[%s749] sm:$0x1]
      %v1582 = vlaneseq
      %v1583 = vshrl.u32 %v1582, 7
      %v1584 = vsub.s32 0, %v1583
      %v1585 = vrot.slane %v1580, %v1584
      %vm1587 = vcmask 523264
      %v1589 = vsel %vm1587, %v1570, 0
      %v1592 = vsel %vm1587, %v1571, 0
      %1594 = vmatprep.subr.mxu0 0.0
      %1595 = vmatpush1.msra.mxu0 0.0
      %1596 = vmatprep.subr.mxu0 0.0
      %1597 = vmatpush1.msra.mxu0 0.0
      %1598 = vmatprep.subr.mxu0 0.0
      %1599 = vmatpush1.msra.mxu0 0.0
      %1600 = vmatprep.subr.mxu0 0.0
      %1601 = vmatpush1.msra.mxu0 0.0
      %1602 = vmatprep.subr.mxu0 0.0
      %1603 = vmatpush1.msra.mxu0 0.0
      %1604 = vmatprep.subr.mxu0 0.0
      %1605 = vmatpush1.msra.mxu0 0.0
      %1606 = vmatprep.subr.mxu0 0.0
      %1607 = vmatpush1.msra.mxu0 0.0
      %1608 = vmatprep.subr.mxu0 0.0
      %1609 = vmatpush1.msra.mxu0 0.0
      %1610 = vmatprep.subr.mxu0 0.0
      %1611 = vmatpush1.msra.mxu0 %v1579
      %1612 = vmatprep.subr.mxu0 0.0
      %1613 = vmatpush1.msra.mxu0 %v1578
      %1614 = vmatprep.subr.mxu0 0.0
      %1615 = vmatpush1.msra.mxu0 %v1577
      %1616 = vmatprep.subr.mxu0 0.0
      %1617 = vmatpush1.msra.mxu0 %v1576
      %1618 = vmatprep.subr.mxu0 0.0
      %1619 = vmatpush1.msra.mxu0 %v1575
      %1620 = vmatprep.subr.mxu0 0.0
      %1621 = vmatpush1.msra.mxu0 %v1574
      %1622 = vmatprep.subr.mxu0 0.0
      %1623 = vmatpush1.msra.mxu0 %v1573
      %1624 = vmatprep.subr.mxu0 0.0
      %1625 = vmatpush1.msra.mxu0 %v1572
      %1626 = vmatprep.subr.mxu0 0.0
      %1627 = vmatpush2.msra.mxu0 0.0
      %1628 = vmatprep.subr.mxu0 0.0
      %1629 = vmatpush2.msra.mxu0 0.0
      %1630 = vmatprep.subr.mxu0 0.0
      %1631 = vmatpush2.msra.mxu0 0.0
      %1632 = vmatprep.subr.mxu0 0.0
      %1633 = vmatpush2.msra.mxu0 0.0
      %1634 = vmatprep.subr.mxu0 0.0
      %1635 = vmatpush2.msra.mxu0 0.0
      %1636 = vmatprep.subr.mxu0 0.0
      %1637 = vmatpush2.msra.mxu0 0.0
      %1638 = vmatprep.subr.mxu0 0.0
      %1639 = vmatpush2.msra.mxu0 0.0
      %1640 = vmatprep.subr.mxu0 0.0
      %1641 = vmatpush2.msra.mxu0 0.0
      %1642 = vmatprep.subr.mxu0 0.0
      %1643 = vmatpush2.msra.mxu0 0.0
      %1644 = vmatprep.subr.mxu0 0.0
      %1645 = vmatpush2.msra.mxu0 0.0
      %1646 = vmatprep.subr.mxu0 0.0
      %1647 = vmatpush2.msra.mxu0 0.0
      %1648 = vmatprep.subr.mxu0 0.0
      %1649 = vmatpush2.msra.mxu0 0.0
      %1650 = vmatprep.subr.mxu0 0.0
      %1651 = vmatpush2.msra.mxu0 0.0
      %1652 = vmatprep.subr.mxu0 0.0
      %1653 = vmatpush2.msra.mxu0 0.0
      %1654 = vmatprep.subr.mxu0 0.0
      %1655 = vmatpush2.msra.mxu0 0.0
      %1656 = vmatprep.subr.mxu0 0.0
      %1657 = vmatpush2.msra.mxu0 0.0
      %1658 = vmatprep.mubr.f32.mxu0 0.0
      %1659 = vmatmul.mubr.f32.gmra.mxu0 %v1589
      %v1660 = vpop.f32.mrf.mxu0
      %v1661 = vadd.f32 %v1585, %v1660
      %v1662 = vpop.f32.mrf.mxu0
      %1663 = vmatprep.mubr.f32.mxu0 0.0
      %1664 = vmatmul.mubr.f32.gmra.mxu0 %v1592
      %v1665 = vpop.f32.mrf.mxu0
      %v1666 = vadd.f32 %v1585, %v1665
      %v1667 = vpop.f32.mrf.mxu0
      %1668 = vdwg.mxu0
      %v1669 = vadd.f32 %v1410, %v1661
      %v1670 = vadd.f32 %v1411, %v1666
      %1671 = vst.msk [vmem:[#allocation2] sm:$0xff] %vm769, %v1669
      %1672 = vst.msk [vmem:[#allocation2 + $0x8] sm:$0xff] %vm769, %v1670
      %p1673 = scmp.eq.s32.totalorder %s33, 1
      // Predicated region
      $region93: #{block_dct_transformer_encoder.3} parent=87 // pred_check
        %p1674 = pneg %p1673
      $region94: #{block_dct_transformer_encoder.3} parent=87 // pred_check_branch
        %1676 = sbr.rel (%p1674) target = $region96
      $region95: #{block_dct_transformer_encoder.3} parent=87 // pred_region
        %v1677 = vld [vmem:[%s13] sm:$0x1]
        %v1678 = vld [vmem:[%s14] sm:$0x1]
        %v1679 = vsel %vm769, %v1669, 0.0
        %1680 = vadd.xlane.f32.xlu0 %v1679
        %v1681 = vpop.xlane.xlu0 %1680
        %v1682 = vsel %vm769, %v1670, 0.0
        %1683 = vadd.xlane.f32.xlu0 %v1682
        %v1684 = vpop.xlane.xlu0 %1683
        %v1685 = vmul.f32 %v1681, %v776
        %v1686 = vmul.f32 %v1684, %v776
        %v1687 = vsub.f32 %v1669, %v1685
        %v1688 = vsub.f32 %v1670, %v1686
        %v1689 = vmul.f32 %v1687, %v1687
        %v1690 = vmul.f32 %v1688, %v1688
        %v1691 = vsel %vm769, %v1689, 0.0
        %1692 = vadd.xlane.f32.xlu0 %v1691
        %v1693 = vpop.xlane.xlu0 %1692
        %v1694 = vsel %vm769, %v1690, 0.0
        %1695 = vadd.xlane.f32.xlu0 %v1694
        %v1696 = vpop.xlane.xlu0 %1695
        %v1697 = vmul.f32 %v1693, %v776
        %v1698 = vmul.f32 %v1696, %v776
        %v1699 = vadd.f32 %v1697, 1e-05
        %v1700 = vadd.f32 %v1698, 1e-05
        %v1701 = vrsqrt.pop %v1699
        %v1702 = vrsqrt.pop %v1700
        %v1703 = vmul.f32 %v1687, %v1701
        %v1704 = vmul.f32 %v1688, %v1702
        %v1706 = vlaneseq
        %v1707 = vshrl.u32 %v1706, 7
        %v1708 = vsub.s32 0, %v1707
        %v1709 = vrot.slane %v1677, %v1708
        %v1711 = vmul.f32 %v1703, %v1709
        %v1712 = vmul.f32 %v1704, %v1709
        %v1714 = vlaneseq
        %v1715 = vshrl.u32 %v1714, 7
        %v1716 = vsub.s32 0, %v1715
        %v1717 = vrot.slane %v1678, %v1716
        %v1719 = vadd.f32 %v1711, %v1717
        %v1720 = vadd.f32 %v1712, %v1717
        %v1721 = vld [vmem:[%s15] sm:$0xff]
        %v1722 = vld [vmem:[%s15 + $0x8] sm:$0xff]
        %v1723 = vld [vmem:[%s15 + $0x10] sm:$0xff]
        %v1724 = vld [vmem:[%s15 + $0x18] sm:$0xff]
        %v1725 = vld [vmem:[%s16] sm:$0x1]
        %v1727 = vlaneseq
        %v1728 = vshrl.u32 %v1727, 7
        %v1729 = vsub.s32 0, %v1728
        %v1730 = vrot.slane %v1725, %v1729
        %v1733 = vsel %vm769, %v1719, 0
        %v1736 = vsel %vm769, %v1720, 0
        %1738 = vmatprep.subr.mxu0 0.0
        %1739 = vmatpush1.msra.mxu0 0.0
        %1740 = vmatprep.subr.mxu0 0.0
        %1741 = vmatpush1.msra.mxu0 0.0
        %1742 = vmatprep.subr.mxu0 0.0
        %1743 = vmatpush1.msra.mxu0 0.0
        %1744 = vmatprep.subr.mxu0 0.0
        %1745 = vmatpush1.msra.mxu0 0.0
        %1746 = vmatprep.subr.mxu0 0.0
        %1747 = vmatpush1.msra.mxu0 0.0
        %1748 = vmatprep.subr.mxu0 0.0
        %1749 = vmatpush1.msra.mxu0 0.0
        %1750 = vmatprep.subr.mxu0 0.0
        %1751 = vmatpush1.msra.mxu0 0.0
        %1752 = vmatprep.subr.mxu0 0.0
        %1753 = vmatpush1.msra.mxu0 0.0
        %1754 = vmatprep.subr.mxu0 0.0
        %1755 = vmatpush1.msra.mxu0 0.0
        %1756 = vmatprep.subr.mxu0 0.0
        %1757 = vmatpush1.msra.mxu0 0.0
        %1758 = vmatprep.subr.mxu0 0.0
        %1759 = vmatpush1.msra.mxu0 0.0
        %1760 = vmatprep.subr.mxu0 0.0
        %1761 = vmatpush1.msra.mxu0 0.0
        %1762 = vmatprep.subr.mxu0 0.0
        %1763 = vmatpush1.msra.mxu0 %v1724
        %1764 = vmatprep.subr.mxu0 0.0
        %1765 = vmatpush1.msra.mxu0 %v1723
        %1766 = vmatprep.subr.mxu0 0.0
        %1767 = vmatpush1.msra.mxu0 %v1722
        %1768 = vmatprep.subr.mxu0 0.0
        %1769 = vmatpush1.msra.mxu0 %v1721
        %1770 = vmatprep.subr.mxu0 0.0
        %1771 = vmatpush2.msra.mxu0 0.0
        %1772 = vmatprep.subr.mxu0 0.0
        %1773 = vmatpush2.msra.mxu0 0.0
        %1774 = vmatprep.subr.mxu0 0.0
        %1775 = vmatpush2.msra.mxu0 0.0
        %1776 = vmatprep.subr.mxu0 0.0
        %1777 = vmatpush2.msra.mxu0 0.0
        %1778 = vmatprep.subr.mxu0 0.0
        %1779 = vmatpush2.msra.mxu0 0.0
        %1780 = vmatprep.subr.mxu0 0.0
        %1781 = vmatpush2.msra.mxu0 0.0
        %1782 = vmatprep.subr.mxu0 0.0
        %1783 = vmatpush2.msra.mxu0 0.0
        %1784 = vmatprep.subr.mxu0 0.0
        %1785 = vmatpush2.msra.mxu0 0.0
        %1786 = vmatprep.subr.mxu0 0.0
        %1787 = vmatpush2.msra.mxu0 0.0
        %1788 = vmatprep.subr.mxu0 0.0
        %1789 = vmatpush2.msra.mxu0 0.0
        %1790 = vmatprep.subr.mxu0 0.0
        %1791 = vmatpush2.msra.mxu0 0.0
        %1792 = vmatprep.subr.mxu0 0.0
        %1793 = vmatpush2.msra.mxu0 0.0
        %1794 = vmatprep.subr.mxu0 0.0
        %1795 = vmatpush2.msra.mxu0 0.0
        %1796 = vmatprep.subr.mxu0 0.0
        %1797 = vmatpush2.msra.mxu0 0.0
        %1798 = vmatprep.subr.mxu0 0.0
        %1799 = vmatpush2.msra.mxu0 0.0
        %1800 = vmatprep.subr.mxu0 0.0
        %1801 = vmatpush2.msra.mxu0 0.0
        %1802 = vmatprep.mubr.f32.mxu0 0.0
        %1803 = vmatmul.mubr.f32.gmra.mxu0 %v1733
        %v1804 = vpop.f32.mrf.mxu0
        %v1805 = vadd.f32 %v1730, %v1804
        %v1806 = vpop.f32.mrf.mxu0
        %1807 = vmatprep.mubr.f32.mxu0 0.0
        %1808 = vmatmul.mubr.f32.gmra.mxu0 %v1736
        %v1809 = vpop.f32.mrf.mxu0
        %v1810 = vadd.f32 %v1730, %v1809
        %v1811 = vpop.f32.mrf.mxu0
        %1812 = vdwg.mxu0
        %1813 = vst [vmem:[%s754] sm:$0xff] %v1805
        %1814 = vst [vmem:[%s754 + $0x8] sm:$0xff] %v1810
      $region96: #{block_dct_transformer_encoder.3} parent=87 // pred_fallthru
        _
      %s1815 = smul.u32 2, %s32
      %p1816 = scmp.lt.s32.totalorder %s1815, 3
      %s1817 = scalar_select %p1816, %s1815, 3
      %s1818 = smul.addr %s1817, 8
      %s1819 = scalar_lea.vmem %s17, %s1818
      // Predicated region
      $region97: #{block_dct_transformer_encoder.3} parent=87 // pred_check
        %p1820 = pneg %p480
      $region98: #{block_dct_transformer_encoder.3} parent=87 // pred_check_branch
        %1822 = sbr.rel (%p1820) target = $region100
      $region99: #{block_dct_transformer_encoder.3} parent=87 // pred_region
        %s1823 = smul.u32 2, %s32
      $region100: #{block_dct_transformer_encoder.3} parent=87 // pred_fallthru
        _
    $region88: #{block_dct_transformer_encoder.3} parent=5 // pred_fallthru
      _
    %p1824 = scmp.le.s32.totalorder 2, %s23
    // Predicated region
    $region101: #{block_dct_transformer_encoder.3} parent=5 // pred_check
      %p1825 = pneg %p1824
    $region102: #{block_dct_transformer_encoder.3} parent=5 // pred_check_branch
      %1827 = sbr.rel (%p1825) target = $region104
    $region103: #{block_dct_transformer_encoder.3} parent=5 // pred_region
      %s1828 = ssub.s32 %s23, 2
      // Predicated region
      $region105: #{block_dct_transformer_encoder.3} parent=103 // pred_check
        %p1829 = pneg %p486
      $region106: #{block_dct_transformer_encoder.3} parent=103 // pred_check_branch
        %1831 = sbr.rel (%p1829) target = $region108
      $region107: #{block_dct_transformer_encoder.3} parent=103 // pred_region
        %s1832 = smul.u32 2, %s34
        %p1833 = scmp.lt.s32.totalorder %s1832, 3
        %s1834 = scalar_select %p1833, %s1832, 3
        %s1835 = smul.addr %s1834, 8
        %s1836 = scalar_lea.vmem %s17, %s1835
      $region108: #{block_dct_transformer_encoder.3} parent=103 // pred_fallthru
        _
    $region104: #{block_dct_transformer_encoder.3} parent=5 // pred_fallthru
      _
  $region6: #{block_dct_transformer_encoder.3} parent=0 // loop_footer
    %s27 = sadd.s32 1, %s23
  $region7: #{block_dct_transformer_encoder.3} parent=0 // loop_footer_branch
    %22 = sbr.rel target = $region3
  $region8: #{block_dct_transformer_encoder.3} parent=0 // loop_exit
    _

</llo_original>
